<compile_context>
chip_gen: v7x
topology: tpu7x:2x2x1
jax: 0.10.0
libtpu: 0.0.40
codegen_flags: <defaults>
</compile_context>

<pallas_src>
import functools

import jax
import jax.numpy as jnp
from jax.experimental import pallas as pl
from jax.experimental.pallas import tpu as pltpu

_TILES = (1024, 512, 256)
_VMEM_BUDGET = 36 << 20   # planning budget (leaves headroom on v7x's 64 MiB)
_VMEM_LIMIT = 48 << 20    # explicit scoped-VMEM limit handed to Mosaic


def _round_up(v, m):
    return ((v + m - 1) // m) * m


def _pick_tile(n):
    """Largest tile keeping quadratic padding waste <=25% and >=2 row blocks."""
    base = _round_up(max(n, 256), 256)
    for t in _TILES[:-1]:
        n_pad = _round_up(n, t)
        if n_pad // t >= 2 and n_pad <= int(1.25 * base):
            return t
    return _TILES[-1]


def _layer_plan(tile, n_pad, f_agg, f_out, out_itemsize, force_streamed=False):
    """Decide VMEM-resident-X vs streamed-X for one layer (all sizes are static)."""
    fixed = (2 * f_agg * f_out * 2               # W (bf16, double-buffered)
             + 2 * tile * f_out * out_itemsize   # output blocks
             + 2 * tile * 128 * 4                # inv_deg (lane-padded to 128)
             + 2 * 8 * f_out * 4)                # bias
    resident = 2 * tile * n_pad * 1 + 2 * n_pad * f_agg * 2 + fixed
    if not force_streamed and resident <= _VMEM_BUDGET:
        return ("resident", tile, None)
    tk = tile
    while tk > 256 and (2 * tile * tk * 1 + 2 * tk * f_agg * 2
                        + tile * f_agg * 4 + fixed) > _VMEM_BUDGET:
        tk //= 2
    return ("streamed", tile, tk)


# ----------------------------- kernels ---------------------------------------


def _make_resident_kernel(apply_w, apply_relu):
    """Whole-row aggregation: out = act( inv_deg*(A_row_panel @ X_full) [@ W] + b )."""

    def _finish(out_f32, b_ref, o_ref):
        out = out_f32 + b_ref[...]
        if apply_relu:
            out = jnp.maximum(out, 0.0)
        o_ref[...] = out.astype(o_ref.dtype)

    if apply_w:
        def kernel(a_ref, x_ref, invd_ref, w_ref, b_ref, o_ref):
            a = a_ref[...].astype(jnp.float32).astype(jnp.bfloat16)   # int8 -> bf16
            agg = jnp.dot(a, x_ref[...], preferred_element_type=jnp.float32)
            agg = (agg * invd_ref[...]).astype(jnp.bfloat16)          # exact 1/deg
            out = jnp.dot(agg, w_ref[...], preferred_element_type=jnp.float32)
            _finish(out, b_ref, o_ref)
    else:
        def kernel(a_ref, x_ref, invd_ref, b_ref, o_ref):
            a = a_ref[...].astype(jnp.float32).astype(jnp.bfloat16)
            agg = jnp.dot(a, x_ref[...], preferred_element_type=jnp.float32)
            _finish(agg * invd_ref[...], b_ref, o_ref)

    return kernel


def _make_streamed_kernel(apply_w, apply_relu):
    """k-blocked aggregation with resident f32 accumulator (pl.when init/finalize)."""

    def _accumulate(a_ref, x_ref, acc_ref):
        @pl.when(pl.program_id(1) == 0)
        def _():
            acc_ref[...] = jnp.zeros_like(acc_ref)

        a = a_ref[...].astype(jnp.float32).astype(jnp.bfloat16)       # int8 -> bf16
        acc_ref[...] += jnp.dot(a, x_ref[...], preferred_element_type=jnp.float32)

    def _finish(out_f32, b_ref, o_ref):
        out = out_f32 + b_ref[...]
        if apply_relu:
            out = jnp.maximum(out, 0.0)
        o_ref[...] = out.astype(o_ref.dtype)

    if apply_w:
        def kernel(a_ref, x_ref, invd_ref, w_ref, b_ref, o_ref, acc_ref):
            _accumulate(a_ref, x_ref, acc_ref)

            @pl.when(pl.program_id(1) == pl.num_programs(1) - 1)
            def _():
                agg = (acc_ref[...] * invd_ref[...]).astype(jnp.bfloat16)
                out = jnp.dot(agg, w_ref[...], preferred_element_type=jnp.float32)
                _finish(out, b_ref, o_ref)
    else:
        def kernel(a_ref, x_ref, invd_ref, b_ref, o_ref, acc_ref):
            _accumulate(a_ref, x_ref, acc_ref)

            @pl.when(pl.program_id(1) == pl.num_programs(1) - 1)
            def _():
                _finish(acc_ref[...] * invd_ref[...], b_ref, o_ref)

    return kernel


# --------------------------- layer runner -------------------------------------


def _gcn_layer(adj_i8, inv_deg, feats, w, b, out_dtype, apply_relu, n_pad, plan):
    mode, tm, tk = plan
    f_agg = feats.shape[1]
    f_out = b.shape[1]
    apply_w = w is not None

    if mode == "resident":
        in_specs = [
            pl.BlockSpec((tm, n_pad), lambda i: (i, 0)),      # int8 adjacency row panel
            pl.BlockSpec((n_pad, f_agg), lambda i: (0, 0)),   # VMEM-resident features
            pl.BlockSpec((tm, 1), lambda i: (i, 0)),          # exact 1/deg (f32)
        ]
        operands = [adj_i8, feats, inv_deg]
        if apply_w:
            in_specs.append(pl.BlockSpec((f_agg, f_out), lambda i: (0, 0)))
            operands.append(w)
        in_specs.append(pl.BlockSpec((1, f_out), lambda i: (0, 0)))
        operands.append(b)
        return pl.pallas_call(
            _make_resident_kernel(apply_w, apply_relu),
            out_shape=jax.ShapeDtypeStruct((n_pad, f_out), out_dtype),
            grid=(n_pad // tm,),
            in_specs=in_specs,
            out_specs=pl.BlockSpec((tm, f_out), lambda i: (i, 0)),
            compiler_params=pltpu.CompilerParams(
                dimension_semantics=("parallel",),
                vmem_limit_bytes=_VMEM_LIMIT,
            ),
        )(*operands)

    # streamed variant: k axis over adjacency columns, f32 accumulator scratch
    in_specs = [
        pl.BlockSpec((tm, tk), lambda i, k: (i, k)),          # int8 adjacency tile
        pl.BlockSpec((tk, f_agg), lambda i, k: (k, 0)),       # feature k-block
        pl.BlockSpec((tm, 1), lambda i, k: (i, 0)),           # exact 1/deg
    ]
    operands = [adj_i8, feats, inv_deg]
    if apply_w:
        in_specs.append(pl.BlockSpec((f_agg, f_out), lambda i, k: (0, 0)))
        operands.append(w)
    in_specs.append(pl.BlockSpec((1, f_out), lambda i, k: (0, 0)))
    operands.append(b)
    return pl.pallas_call(
        _make_streamed_kernel(apply_w, apply_relu),
        out_shape=jax.ShapeDtypeStruct((n_pad, f_out), out_dtype),
        grid=(n_pad // tm, n_pad // tk),
        in_specs=in_specs,
        out_specs=pl.BlockSpec((tm, f_out), lambda i, k: (i, 0)),
        scratch_shapes=[pltpu.VMEM((tm, f_agg), jnp.float32)],
        compiler_params=pltpu.CompilerParams(
            dimension_semantics=("parallel", "arbitrary"),
            vmem_limit_bytes=_VMEM_LIMIT,
        ),
    )(*operands)


# ------------------------------ forward ---------------------------------------


@functools.partial(jax.jit, static_argnames=("force_streamed",))
def gnn_forward(x, edge_index, w1, b1, w2, b2, *, force_streamed=False):
    """x: [N, in_ch] f32, edge_index: [2, E] int32 (src row, dst row)."""
    n, in_ch = x.shape
    hid_ch = w1.shape[1]
    out_ch = w2.shape[1]

    in_pad = _round_up(in_ch, 128)
    hid_pad = _round_up(hid_ch, 128)
    out_pad = _round_up(out_ch, 128)

    tile = _pick_tile(n)
    n_pad = _round_up(max(n, tile), tile)

    # --- glue: int8 adjacency with self-loops, exact inverse degree (O(E)) ---
    src, dst = edge_index[0], edge_index[1]
    loops = jnp.arange(n, dtype=edge_index.dtype)
    src_all = jnp.concatenate([src, loops])
    dst_all = jnp.concatenate([dst, loops])

    adj = jnp.zeros((n_pad, n_pad), jnp.int32).at[dst_all, src_all].add(1)
    adj_i8 = jnp.clip(adj, 0, 127).astype(jnp.int8)
    deg = jnp.zeros((n_pad, 1), jnp.float32).at[dst_all, 0].add(1.0)
    inv_deg = 1.0 / jnp.maximum(deg, 1.0)   # exact; padded rows stay finite

    b1_p = jnp.zeros((1, hid_pad), jnp.float32).at[:, :hid_ch].set(
        b1.reshape(1, -1).astype(jnp.float32))
    b2_p = jnp.zeros((1, out_pad), jnp.float32).at[:, :out_ch].set(
        b2.reshape(1, -1).astype(jnp.float32))

    # --- layer 1: H = relu(A_hat @ X @ W1 + b1); aggregate in the narrower width ---
    if in_pad <= hid_pad:
        feats1 = jnp.zeros((n_pad, in_pad), jnp.bfloat16).at[:n, :in_ch].set(
            x.astype(jnp.bfloat16))
        w1_arg = jnp.zeros((in_pad, hid_pad), jnp.bfloat16).at[:in_ch, :hid_ch].set(
            w1.astype(jnp.bfloat16))
        f_agg1 = in_pad
    else:  # transform-first: tiny GEMM in the wrapper, aggregate in hidden space
        xw = x.astype(jnp.float32) @ w1.astype(jnp.float32)
        feats1 = jnp.zeros((n_pad, hid_pad), jnp.bfloat16).at[:n, :hid_ch].set(
            xw.astype(jnp.bfloat16))
        w1_arg = None
        f_agg1 = hid_pad
    plan1 = _layer_plan(tile, n_pad, f_agg1, hid_pad, 2, force_streamed)
    h = _gcn_layer(adj_i8, inv_deg, feats1, w1_arg, b1_p, jnp.bfloat16, True,
                   n_pad, plan1)

    # --- layer 2: Out = A_hat @ H @ W2 + b2 ---
    if hid_pad <= out_pad:
        w2_arg = jnp.zeros((hid_pad, out_pad), jnp.bfloat16).at[:hid_ch, :out_ch].set(
            w2.astype(jnp.bfloat16))
        feats2 = h
        f_agg2 = hid_pad
    else:
        hw = h.astype(jnp.float32)[:, :hid_ch] @ w2.astype(jnp.float32)
        feats2 = jnp.zeros((n_pad, out_pad), jnp.bfloat16).at[:, :out_ch].set(
            hw.astype(jnp.bfloat16))
        w2_arg = None
        f_agg2 = out_pad
    plan2 = _layer_plan(tile, n_pad, f_agg2, out_pad, 4, force_streamed)
    out = _gcn_layer(adj_i8, inv_deg, feats2, w2_arg, b2_p, jnp.float32, False,
                     n_pad, plan2)

    return out[:n, :out_ch]


# ------------------------------- test ------------------------------------------


def _reference(x, edge_index, w1, b1, w2, b2):
    n = x.shape[0]
    adj = jnp.zeros((n, n), jnp.float32).at[edge_index[1], edge_index[0]].add(1.0)
    adj = adj + jnp.eye(n, dtype=jnp.float32)
    adj = adj / jnp.sum(adj, axis=1, keepdims=True)
    h = jnp.maximum(adj @ (x @ w1) + b1, 0.0)
    return adj @ (h @ w2) + b2


if __name__ == "__main__":
    key = jax.random.PRNGKey(0)

    def make_case(case_key, n, e, in_ch, hid_ch, out_ch):
        kx, ke, k1, k2 = jax.random.split(case_key, 4)
        x = jax.random.normal(kx, (n, in_ch), jnp.float32)
        edge_index = jax.random.randint(ke, (2, e), 0, n, dtype=jnp.int32)
        w1 = jax.random.normal(k1, (in_ch, hid_ch), jnp.float32) / jnp.sqrt(1.0 * in_ch)
        b1 = jax.random.normal(jax.random.fold_in(k1, 1), (1, hid_ch), jnp.float32) * 0.1
        w2 = jax.random.normal(k2, (hid_ch, out_ch), jnp.float32) / jnp.sqrt(1.0 * hid_ch)
        b2 = jax.random.normal(jax.random.fold_in(k2, 1), (1, out_ch), jnp.float32) * 0.1
        return x, edge_index, w1, b1, w2, b2

    # Case A: aggregate-first both layers, VMEM-resident features.
    args_a = make_case(jax.random.fold_in(key, 0), 8, 16, 4, 32, 16)
    out_a = jax.block_until_ready(gnn_forward(*args_a))
    ref_a = _reference(*args_a)
    assert out_a.shape == ref_a.shape
    assert jnp.allclose(out_a, ref_a, atol=5e-2, rtol=5e-2), "case A mismatch"

    # Case B: wide input -> layer-1 transform-first (X@W1 in wrapper), resident path.
    args_b = make_case(jax.random.fold_in(key, 1), 12, 24, 200, 32, 16)
    out_b = jax.block_until_ready(gnn_forward(*args_b))
    ref_b = _reference(*args_b)
    assert jnp.allclose(out_b, ref_b, atol=5e-2, rtol=5e-2), "case B mismatch"

    # Case C: same graph, force the streamed (k-blocked accumulator) code path.
    out_c = jax.block_until_ready(gnn_forward(*args_b, force_streamed=True))
    assert jnp.allclose(out_c, ref_b, atol=5e-2, rtol=5e-2), "case C (streamed) mismatch"

    print("KERNEL_OK")
</pallas_src>

<mosaic_0001>
module attributes {stable_mosaic.version = 11 : i64} {
  func.func @kernel(%arg0: i32, %arg1: memref<256x256xi8, #tpu.memory_space<vmem>>, %arg2: memref<256x128xbf16, #tpu.memory_space<vmem>>, %arg3: memref<256x1xf32, #tpu.memory_space<vmem>>, %arg4: memref<128x128xbf16, #tpu.memory_space<vmem>>, %arg5: memref<1x128xf32, #tpu.memory_space<vmem>>, %arg6: memref<256x128xbf16, #tpu.memory_space<vmem>>) attributes {dimension_semantics = [#tpu.dimension_semantics<parallel>], iteration_bounds = array<i64: 1>, scalar_prefetch = 0 : i64, scratch_operands = 0 : i64, tpu.core_type = #tpu.core_type<tc>, window_params = [{transform_indices = @transform_0, window_bounds = array<i64: 256, 256>}, {pipeline_mode = #tpu.pipeline_mode<synchronous>, transform_indices = @transform_1, window_bounds = array<i64: 256, 128>}, {transform_indices = @transform_2, window_bounds = array<i64: 256, 1>}, {pipeline_mode = #tpu.pipeline_mode<synchronous>, transform_indices = @transform_3, window_bounds = array<i64: 128, 128>}, {pipeline_mode = #tpu.pipeline_mode<synchronous>, transform_indices = @transform_4, window_bounds = array<i64: 1, 128>}, {transform_indices = @transform_5, window_bounds = array<i64: 256, 128>}]} {
    %c0 = arith.constant 0 : index
    %c0_0 = arith.constant 0 : index
    %0 = vector.load %arg1[%c0, %c0_0] : memref<256x256xi8, #tpu.memory_space<vmem>>, vector<256x256xi8>
    %1 = arith.sitofp %0 : vector<256x256xi8> to vector<256x256xf32>
    %2 = arith.truncf %1 : vector<256x256xf32> to vector<256x256xbf16>
    %c0_1 = arith.constant 0 : index
    %c0_2 = arith.constant 0 : index
    %3 = vector.load %arg2[%c0_1, %c0_2] : memref<256x128xbf16, #tpu.memory_space<vmem>>, vector<256x128xbf16>
    %cst = arith.constant dense<0.000000e+00> : vector<256x128xf32>
    %4 = tpu.matmul %2, %3, %cst {dimension_numbers = #tpu.dot_dimension_numbers<[1], [0], [0], [1], [0, 0, 1, 1], [], []>} : vector<256x256xbf16>, vector<256x128xbf16>, vector<256x128xf32> -> vector<256x128xf32>
    %c0_3 = arith.constant 0 : index
    %c0_4 = arith.constant 0 : index
    %5 = vector.load %arg3[%c0_3, %c0_4] : memref<256x1xf32, #tpu.memory_space<vmem>>, vector<256x1xf32>
    %6 = vector.broadcast %5 : vector<256x1xf32> to vector<256x128xf32>
    %7 = arith.mulf %4, %6 : vector<256x128xf32>
    %8 = arith.truncf %7 : vector<256x128xf32> to vector<256x128xbf16>
    %c0_5 = arith.constant 0 : index
    %c0_6 = arith.constant 0 : index
    %9 = vector.load %arg4[%c0_5, %c0_6] : memref<128x128xbf16, #tpu.memory_space<vmem>>, vector<128x128xbf16>
    %cst_7 = arith.constant dense<0.000000e+00> : vector<256x128xf32>
    %10 = tpu.matmul %8, %9, %cst_7 {dimension_numbers = #tpu.dot_dimension_numbers<[1], [0], [0], [1], [0, 0, 1, 1], [], []>} : vector<256x128xbf16>, vector<128x128xbf16>, vector<256x128xf32> -> vector<256x128xf32>
    %c0_8 = arith.constant 0 : index
    %c0_9 = arith.constant 0 : index
    %11 = vector.load %arg5[%c0_8, %c0_9] : memref<1x128xf32, #tpu.memory_space<vmem>>, vector<1x128xf32>
    %12 = vector.broadcast %11 : vector<1x128xf32> to vector<256x128xf32>
    %13 = arith.addf %10, %12 : vector<256x128xf32>
    %cst_10 = arith.constant 0.000000e+00 : f32
    %14 = vector.broadcast %cst_10 : f32 to vector<256x128xf32>
    %15 = arith.maximumf %13, %14 : vector<256x128xf32>
    %16 = arith.truncf %15 : vector<256x128xf32> to vector<256x128xbf16>
    %c0_11 = arith.constant 0 : index
    %c0_12 = arith.constant 0 : index
    %17 = vector.load %arg6[%c0_11, %c0_12] : memref<256x128xbf16, #tpu.memory_space<vmem>>, vector<256x128xbf16>
    tpu.vector_store %arg6[%c0_11, %c0_12], %16 {strides = array<i32>} : memref<256x128xbf16, #tpu.memory_space<vmem>>, vector<256x128xbf16>,
    return
  }
  func.func @transform_0(%arg0: i32) -> (i32, i32) {
    %c0_i32 = arith.constant 0 : i32
    %c0_i32_0 = arith.constant 0 : i32
    return %arg0, %c0_i32 : i32, i32
  }
  func.func @transform_1(%arg0: i32) -> (i32, i32) {
    %c0_i32 = arith.constant 0 : i32
    %c0_i32_0 = arith.constant 0 : i32
    %c0_i32_1 = arith.constant 0 : i32
    return %c0_i32, %c0_i32_0 : i32, i32
  }
  func.func @transform_2(%arg0: i32) -> (i32, i32) {
    %c0_i32 = arith.constant 0 : i32
    %c0_i32_0 = arith.constant 0 : i32
    return %arg0, %c0_i32 : i32, i32
  }
  func.func @transform_3(%arg0: i32) -> (i32, i32) {
    %c0_i32 = arith.constant 0 : i32
    %c0_i32_0 = arith.constant 0 : i32
    %c0_i32_1 = arith.constant 0 : i32
    return %c0_i32, %c0_i32_0 : i32, i32
  }
  func.func @transform_4(%arg0: i32) -> (i32, i32) {
    %c0_i32 = arith.constant 0 : i32
    %c0_i32_0 = arith.constant 0 : i32
    %c0_i32_1 = arith.constant 0 : i32
    return %c0_i32, %c0_i32_0 : i32, i32
  }
  func.func @transform_5(%arg0: i32) -> (i32, i32) {
    %c0_i32 = arith.constant 0 : i32
    %c0_i32_0 = arith.constant 0 : i32
    return %arg0, %c0_i32 : i32, i32
  }
}

module attributes {stable_mosaic.version = 11 : i64} {
  func.func @kernel(%arg0: i32, %arg1: memref<256x256xi8, #tpu.memory_space<vmem>>, %arg2: memref<256x128xbf16, #tpu.memory_space<vmem>>, %arg3: memref<256x1xf32, #tpu.memory_space<vmem>>, %arg4: memref<128x128xbf16, #tpu.memory_space<vmem>>, %arg5: memref<1x128xf32, #tpu.memory_space<vmem>>, %arg6: memref<256x128xf32, #tpu.memory_space<vmem>>) attributes {dimension_semantics = [#tpu.dimension_semantics<parallel>], iteration_bounds = array<i64: 1>, scalar_prefetch = 0 : i64, scratch_operands = 0 : i64, tpu.core_type = #tpu.core_type<tc>, window_params = [{transform_indices = @transform_0, window_bounds = array<i64: 256, 256>}, {pipeline_mode = #tpu.pipeline_mode<synchronous>, transform_indices = @transform_1, window_bounds = array<i64: 256, 128>}, {transform_indices = @transform_2, window_bounds = array<i64: 256, 1>}, {pipeline_mode = #tpu.pipeline_mode<synchronous>, transform_indices = @transform_3, window_bounds = array<i64: 128, 128>}, {pipeline_mode = #tpu.pipeline_mode<synchronous>, transform_indices = @transform_4, window_bounds = array<i64: 1, 128>}, {transform_indices = @transform_5, window_bounds = array<i64: 256, 128>}]} {
    %c0 = arith.constant 0 : index
    %c0_0 = arith.constant 0 : index
    %0 = vector.load %arg1[%c0, %c0_0] : memref<256x256xi8, #tpu.memory_space<vmem>>, vector<256x256xi8>
    %1 = arith.sitofp %0 : vector<256x256xi8> to vector<256x256xf32>
    %2 = arith.truncf %1 : vector<256x256xf32> to vector<256x256xbf16>
    %c0_1 = arith.constant 0 : index
    %c0_2 = arith.constant 0 : index
    %3 = vector.load %arg2[%c0_1, %c0_2] : memref<256x128xbf16, #tpu.memory_space<vmem>>, vector<256x128xbf16>
    %cst = arith.constant dense<0.000000e+00> : vector<256x128xf32>
    %4 = tpu.matmul %2, %3, %cst {dimension_numbers = #tpu.dot_dimension_numbers<[1], [0], [0], [1], [0, 0, 1, 1], [], []>} : vector<256x256xbf16>, vector<256x128xbf16>, vector<256x128xf32> -> vector<256x128xf32>
    %c0_3 = arith.constant 0 : index
    %c0_4 = arith.constant 0 : index
    %5 = vector.load %arg3[%c0_3, %c0_4] : memref<256x1xf32, #tpu.memory_space<vmem>>, vector<256x1xf32>
    %6 = vector.broadcast %5 : vector<256x1xf32> to vector<256x128xf32>
    %7 = arith.mulf %4, %6 : vector<256x128xf32>
    %8 = arith.truncf %7 : vector<256x128xf32> to vector<256x128xbf16>
    %c0_5 = arith.constant 0 : index
    %c0_6 = arith.constant 0 : index
    %9 = vector.load %arg4[%c0_5, %c0_6] : memref<128x128xbf16, #tpu.memory_space<vmem>>, vector<128x128xbf16>
    %cst_7 = arith.constant dense<0.000000e+00> : vector<256x128xf32>
    %10 = tpu.matmul %8, %9, %cst_7 {dimension_numbers = #tpu.dot_dimension_numbers<[1], [0], [0], [1], [0, 0, 1, 1], [], []>} : vector<256x128xbf16>, vector<128x128xbf16>, vector<256x128xf32> -> vector<256x128xf32>
    %c0_8 = arith.constant 0 : index
    %c0_9 = arith.constant 0 : index
    %11 = vector.load %arg5[%c0_8, %c0_9] : memref<1x128xf32, #tpu.memory_space<vmem>>, vector<1x128xf32>
    %12 = vector.broadcast %11 : vector<1x128xf32> to vector<256x128xf32>
    %13 = arith.addf %10, %12 : vector<256x128xf32>
    %c0_10 = arith.constant 0 : index
    %c0_11 = arith.constant 0 : index
    %14 = vector.load %arg6[%c0_10, %c0_11] : memref<256x128xf32, #tpu.memory_space<vmem>>, vector<256x128xf32>
    tpu.vector_store %arg6[%c0_10, %c0_11], %13 {strides = array<i32>} : memref<256x128xf32, #tpu.memory_space<vmem>>, vector<256x128xf32>,
    return
  }
  func.func @transform_0(%arg0: i32) -> (i32, i32) {
    %c0_i32 = arith.constant 0 : i32
    %c0_i32_0 = arith.constant 0 : i32
    return %arg0, %c0_i32 : i32, i32
  }
  func.func @transform_1(%arg0: i32) -> (i32, i32) {
    %c0_i32 = arith.constant 0 : i32
    %c0_i32_0 = arith.constant 0 : i32
    %c0_i32_1 = arith.constant 0 : i32
    return %c0_i32, %c0_i32_0 : i32, i32
  }
  func.func @transform_2(%arg0: i32) -> (i32, i32) {
    %c0_i32 = arith.constant 0 : i32
    %c0_i32_0 = arith.constant 0 : i32
    return %arg0, %c0_i32 : i32, i32
  }
  func.func @transform_3(%arg0: i32) -> (i32, i32) {
    %c0_i32 = arith.constant 0 : i32
    %c0_i32_0 = arith.constant 0 : i32
    %c0_i32_1 = arith.constant 0 : i32
    return %c0_i32, %c0_i32_0 : i32, i32
  }
  func.func @transform_4(%arg0: i32) -> (i32, i32) {
    %c0_i32 = arith.constant 0 : i32
    %c0_i32_0 = arith.constant 0 : i32
    %c0_i32_1 = arith.constant 0 : i32
    return %c0_i32, %c0_i32_0 : i32, i32
  }
  func.func @transform_5(%arg0: i32) -> (i32, i32) {
    %c0_i32 = arith.constant 0 : i32
    %c0_i32_0 = arith.constant 0 : i32
    return %arg0, %c0_i32 : i32, i32
  }
}

</mosaic_0001>

<llo_original>
// kernel: gnn_forward.2
$region0: #{gnn_forward.2}
  #allocation0 [shape = 'u32[]', space=smem, size = 0x4, offset = 0x4, fixed_abs, tag = 'smem constant byte address 0x4 - core index']
  #allocation1 [shape = 'u32[144,128]{1,0:T(1,128)}', space=vmem, size = 0x12000, scoped, tag = 'internal scratch']
  %s0 = inlined_call_operand.vmem [shape: s8[256,256], index: 0, kind: input, shape index: {}]
  %s1 = inlined_call_operand.vmem [shape: bf16[256,128], index: 1, kind: input, shape index: {}]
  %s2 = inlined_call_operand.vmem [shape: f32[256,1], index: 2, kind: input, shape index: {}]
  %s3 = inlined_call_operand.vmem [shape: bf16[128,128], index: 3, kind: input, shape index: {}]
  %s4 = inlined_call_operand.vmem [shape: f32[1,128], index: 4, kind: input, shape index: {}]
  %s5 = inlined_call_operand.vmem [shape: bf16[256,128], index: 5, kind: output, shape index: {}]
  %s6 = sld [smem:[#allocation0]]
  $region30: #{gnn_forward.2} parent=0
    _
  %s8 = ssub.s32 1, %s6
  %s9 = scalar_select 0, %s8, %s6
  // Predicated region
  $region2: #{gnn_forward.2} parent=0 // pred_check
    _
  $region3: #{gnn_forward.2} parent=0 // pred_check_branch
    %11 = sbr.rel (0) target = $region5
  $region4: #{gnn_forward.2} parent=0 // pred_region
    _
  $region5: #{gnn_forward.2} parent=0 // pred_fallthru
    _
  // Predicated region
  $region6: #{gnn_forward.2} parent=0 // pred_check
    _
  $region7: #{gnn_forward.2} parent=0 // pred_check_branch
    %13 = sbr.rel (0) target = $region9
  $region8: #{gnn_forward.2} parent=0 // pred_region
    _
  $region9: #{gnn_forward.2} parent=0 // pred_fallthru
    _
  // Predicated region
  $region10: #{gnn_forward.2} parent=0 // pred_check
    _
  $region11: #{gnn_forward.2} parent=0 // pred_check_branch
    %15 = sbr.rel (0) target = $region13
  $region12: #{gnn_forward.2} parent=0 // pred_region
    _
  $region13: #{gnn_forward.2} parent=0 // pred_fallthru
    _
  // Predicated region
  $region14: #{gnn_forward.2} parent=0 // pred_check
    _
  $region15: #{gnn_forward.2} parent=0 // pred_check_branch
    %17 = sbr.rel (0) target = $region17
  $region16: #{gnn_forward.2} parent=0 // pred_region
    _
  $region17: #{gnn_forward.2} parent=0 // pred_fallthru
    _
  // Predicated region
  $region18: #{gnn_forward.2} parent=0 // pred_check
    _
  $region19: #{gnn_forward.2} parent=0 // pred_check_branch
    %19 = sbr.rel (0) target = $region21
  $region20: #{gnn_forward.2} parent=0 // pred_region
    _
  $region21: #{gnn_forward.2} parent=0 // pred_fallthru
    _
  %v21 = vld [vmem:[%s0] sm:$0xff]
  %v22 = vld [vmem:[%s0 + $0x8] sm:$0xff]
  %v23 = vld [vmem:[%s0 + $0x10] sm:$0xff]
  %v24 = vld [vmem:[%s0 + $0x18] sm:$0xff]
  %v25 = vld [vmem:[%s0 + $0x20] sm:$0xff]
  %v26 = vld [vmem:[%s0 + $0x28] sm:$0xff]
  %v27 = vld [vmem:[%s0 + $0x30] sm:$0xff]
  %v28 = vld [vmem:[%s0 + $0x38] sm:$0xff]
  %v29 = vld [vmem:[%s0 + $0x40] sm:$0xff]
  %v30 = vld [vmem:[%s0 + $0x48] sm:$0xff]
  %v31 = vld [vmem:[%s0 + $0x50] sm:$0xff]
  %v32 = vld [vmem:[%s0 + $0x58] sm:$0xff]
  %v33 = vld [vmem:[%s0 + $0x60] sm:$0xff]
  %v34 = vld [vmem:[%s0 + $0x68] sm:$0xff]
  %v35 = vld [vmem:[%s0 + $0x70] sm:$0xff]
  %v36 = vld [vmem:[%s0 + $0x78] sm:$0xff]
  %v37 = vunpack.c.l.s8.bf16 %v21
  %v38 = vunpack.c.l.s8.bf16 %v22
  %v39 = vunpack.c.h.s8.bf16 %v21
  %v40 = vunpack.c.h.s8.bf16 %v22
  %v41 = vunpack.c.l.s8.bf16 %v23
  %v42 = vunpack.c.l.s8.bf16 %v24
  %v43 = vunpack.c.h.s8.bf16 %v23
  %v44 = vunpack.c.h.s8.bf16 %v24
  %v45 = vunpack.c.l.s8.bf16 %v25
  %v46 = vunpack.c.l.s8.bf16 %v26
  %v47 = vunpack.c.h.s8.bf16 %v25
  %v48 = vunpack.c.h.s8.bf16 %v26
  %v49 = vunpack.c.l.s8.bf16 %v27
  %v50 = vunpack.c.l.s8.bf16 %v28
  %v51 = vunpack.c.h.s8.bf16 %v27
  %v52 = vunpack.c.h.s8.bf16 %v28
  %v53 = vunpack.c.l.s8.bf16 %v29
  %v54 = vunpack.c.l.s8.bf16 %v30
  %v55 = vunpack.c.h.s8.bf16 %v29
  %v56 = vunpack.c.h.s8.bf16 %v30
  %v57 = vunpack.c.l.s8.bf16 %v31
  %v58 = vunpack.c.l.s8.bf16 %v32
  %v59 = vunpack.c.h.s8.bf16 %v31
  %v60 = vunpack.c.h.s8.bf16 %v32
  %v61 = vunpack.c.l.s8.bf16 %v33
  %v62 = vunpack.c.l.s8.bf16 %v34
  %v63 = vunpack.c.h.s8.bf16 %v33
  %v64 = vunpack.c.h.s8.bf16 %v34
  %v65 = vunpack.c.l.s8.bf16 %v35
  %v66 = vunpack.c.l.s8.bf16 %v36
  %v67 = vunpack.c.h.s8.bf16 %v35
  %v68 = vunpack.c.h.s8.bf16 %v36
  %v69 = vld [vmem:[%s1] sm:$0xf]
  %v70 = vld [vmem:[%s1 + $0x4] sm:$0xf]
  %v71 = vld [vmem:[%s1 + $0x8] sm:$0xf]
  %v72 = vld [vmem:[%s1 + $0xc] sm:$0xf]
  %v73 = vld [vmem:[%s1 + $0x10] sm:$0xf]
  %v74 = vld [vmem:[%s1 + $0x14] sm:$0xf]
  %v75 = vld [vmem:[%s1 + $0x18] sm:$0xf]
  %v76 = vld [vmem:[%s1 + $0x1c] sm:$0xf]
  %v77 = vld [vmem:[%s1 + $0x20] sm:$0xf]
  %v78 = vld [vmem:[%s1 + $0x24] sm:$0xf]
  %v79 = vld [vmem:[%s1 + $0x28] sm:$0xf]
  %v80 = vld [vmem:[%s1 + $0x2c] sm:$0xf]
  %v81 = vld [vmem:[%s1 + $0x30] sm:$0xf]
  %v82 = vld [vmem:[%s1 + $0x34] sm:$0xf]
  %v83 = vld [vmem:[%s1 + $0x38] sm:$0xf]
  %v84 = vld [vmem:[%s1 + $0x3c] sm:$0xf]
  %v85 = vld [vmem:[%s1 + $0x40] sm:$0xf]
  %v86 = vld [vmem:[%s1 + $0x44] sm:$0xf]
  %v87 = vld [vmem:[%s1 + $0x48] sm:$0xf]
  %v88 = vld [vmem:[%s1 + $0x4c] sm:$0xf]
  %v89 = vld [vmem:[%s1 + $0x50] sm:$0xf]
  %v90 = vld [vmem:[%s1 + $0x54] sm:$0xf]
  %v91 = vld [vmem:[%s1 + $0x58] sm:$0xf]
  %v92 = vld [vmem:[%s1 + $0x5c] sm:$0xf]
  %v93 = vld [vmem:[%s1 + $0x60] sm:$0xf]
  %v94 = vld [vmem:[%s1 + $0x64] sm:$0xf]
  %v95 = vld [vmem:[%s1 + $0x68] sm:$0xf]
  %v96 = vld [vmem:[%s1 + $0x6c] sm:$0xf]
  %v97 = vld [vmem:[%s1 + $0x70] sm:$0xf]
  %v98 = vld [vmem:[%s1 + $0x74] sm:$0xf]
  %v99 = vld [vmem:[%s1 + $0x78] sm:$0xf]
  %v100 = vld [vmem:[%s1 + $0x7c] sm:$0xf]
  %v133 = vunpack.c.l.b16 %v69
  %v134 = vunpack.c.l.b16 %v70
  %v135 = vunpack.c.l.b16 %v71
  %v136 = vunpack.c.l.b16 %v72
  %v137 = vunpack.c.l.b16 %v73
  %v138 = vunpack.c.l.b16 %v74
  %v139 = vunpack.c.l.b16 %v75
  %v140 = vunpack.c.l.b16 %v76
  %v141 = vunpack.c.l.b16 %v77
  %v142 = vunpack.c.l.b16 %v78
  %v143 = vunpack.c.l.b16 %v79
  %v144 = vunpack.c.l.b16 %v80
  %v145 = vunpack.c.l.b16 %v81
  %v146 = vunpack.c.l.b16 %v82
  %v147 = vunpack.c.l.b16 %v83
  %v148 = vunpack.c.l.b16 %v84
  %v149 = vunpack.c.l.b16 %v85
  %v150 = vunpack.c.l.b16 %v86
  %v151 = vunpack.c.l.b16 %v87
  %v152 = vunpack.c.l.b16 %v88
  %v153 = vunpack.c.l.b16 %v89
  %v154 = vunpack.c.l.b16 %v90
  %v155 = vunpack.c.l.b16 %v91
  %v156 = vunpack.c.l.b16 %v92
  %v157 = vunpack.c.l.b16 %v93
  %v158 = vunpack.c.l.b16 %v94
  %v159 = vunpack.c.l.b16 %v95
  %v160 = vunpack.c.l.b16 %v96
  %v161 = vunpack.c.l.b16 %v97
  %v162 = vunpack.c.l.b16 %v98
  %v163 = vunpack.c.l.b16 %v99
  %v164 = vunpack.c.l.b16 %v100
  %v165 = vpack.c.b16 %v134, %v133
  %v166 = vpack.c.b16 %v136, %v135
  %v167 = vpack.c.b16 %v138, %v137
  %v168 = vpack.c.b16 %v140, %v139
  %v169 = vpack.c.b16 %v142, %v141
  %v170 = vpack.c.b16 %v144, %v143
  %v171 = vpack.c.b16 %v146, %v145
  %v172 = vpack.c.b16 %v148, %v147
  %v173 = vpack.c.b16 %v150, %v149
  %v174 = vpack.c.b16 %v152, %v151
  %v175 = vpack.c.b16 %v154, %v153
  %v176 = vpack.c.b16 %v156, %v155
  %v177 = vpack.c.b16 %v158, %v157
  %v178 = vpack.c.b16 %v160, %v159
  %v179 = vpack.c.b16 %v162, %v161
  %v180 = vpack.c.b16 %v164, %v163
  %197 = vmatprep.subr.bf16.mxu0 0
  %198 = vmatpush1.bf16.msra.mxu0 %v165
  %199 = vmatprep.subr.bf16.mxu0 0
  %200 = vmatpush1.bf16.msra.mxu0 %v166
  %201 = vmatprep.subr.bf16.mxu0 0
  %202 = vmatpush1.bf16.msra.mxu0 %v167
  %203 = vmatprep.subr.bf16.mxu0 0
  %204 = vmatpush1.bf16.msra.mxu0 %v168
  %205 = vmatprep.subr.bf16.mxu0 0
  %206 = vmatpush1.bf16.msra.mxu0 %v169
  %207 = vmatprep.subr.bf16.mxu0 0
  %208 = vmatpush1.bf16.msra.mxu0 %v170
  %209 = vmatprep.subr.bf16.mxu0 0
  %210 = vmatpush1.bf16.msra.mxu0 %v171
  %211 = vmatprep.subr.bf16.mxu0 0
  %212 = vmatpush1.bf16.msra.mxu0 %v172
  %213 = vmatprep.subr.bf16.mxu0 0
  %214 = vmatpush1.bf16.msra.mxu0 %v173
  %215 = vmatprep.subr.bf16.mxu0 0
  %216 = vmatpush1.bf16.msra.mxu0 %v174
  %217 = vmatprep.subr.bf16.mxu0 0
  %218 = vmatpush1.bf16.msra.mxu0 %v175
  %219 = vmatprep.subr.bf16.mxu0 0
  %220 = vmatpush1.bf16.msra.mxu0 %v176
  %221 = vmatprep.subr.bf16.mxu0 0
  %222 = vmatpush1.bf16.msra.mxu0 %v177
  %223 = vmatprep.subr.bf16.mxu0 0
  %224 = vmatpush1.bf16.msra.mxu0 %v178
  %225 = vmatprep.subr.bf16.mxu0 0
  %226 = vmatpush1.bf16.msra.mxu0 %v179
  %227 = vmatprep.subr.bf16.mxu0 0
  %228 = vmatpush1.bf16.msra.mxu0 %v180
  %229 = vmatprep.mubr.bf16.mxu0 %v38
  %230 = vmatmul.mubr.bf16.gmra.mrb[0].mxu0 %v37
  %v231 = vpop.f32.mrb[0].mxu0
  %v232 = vadd.f32 0.0, %v231
  %v233 = vpop.f32.mrb[0].mxu0
  %v234 = vpop.f32.mrb[0].mxu0
  %v235 = vadd.f32 0.0, %v234
  %v236 = vpop.f32.mrb[0].mxu0
  %237 = vmatprep.mubr.bf16.mxu0 %v40
  %238 = vmatmul.mubr.bf16.gmra.mrb[0].mxu0 %v39
  %v239 = vpop.f32.mrb[0].mxu0
  %v240 = vadd.f32 0.0, %v239
  %v241 = vpop.f32.mrb[0].mxu0
  %v242 = vpop.f32.mrb[0].mxu0
  %v243 = vadd.f32 0.0, %v242
  %v244 = vpop.f32.mrb[0].mxu0
  %245 = vmatprep.mubr.bf16.mxu0 %v42
  %246 = vmatmul.mubr.bf16.gmra.mrb[0].mxu0 %v41
  %v247 = vpop.f32.mrb[0].mxu0
  %v248 = vadd.f32 0.0, %v247
  %v249 = vpop.f32.mrb[0].mxu0
  %v250 = vpop.f32.mrb[0].mxu0
  %v251 = vadd.f32 0.0, %v250
  %v252 = vpop.f32.mrb[0].mxu0
  %253 = vmatprep.mubr.bf16.mxu0 %v44
  %254 = vmatmul.mubr.bf16.gmra.mrb[0].mxu0 %v43
  %v255 = vpop.f32.mrb[0].mxu0
  %v256 = vadd.f32 0.0, %v255
  %v257 = vpop.f32.mrb[0].mxu0
  %v258 = vpop.f32.mrb[0].mxu0
  %v259 = vadd.f32 0.0, %v258
  %v260 = vpop.f32.mrb[0].mxu0
  %261 = vmatprep.mubr.bf16.mxu0 %v46
  %262 = vmatmul.mubr.bf16.gmra.mrb[0].mxu0 %v45
  %v263 = vpop.f32.mrb[0].mxu0
  %v264 = vadd.f32 0.0, %v263
  %v265 = vpop.f32.mrb[0].mxu0
  %v266 = vpop.f32.mrb[0].mxu0
  %v267 = vadd.f32 0.0, %v266
  %v268 = vpop.f32.mrb[0].mxu0
  %269 = vmatprep.mubr.bf16.mxu0 %v48
  %270 = vmatmul.mubr.bf16.gmra.mrb[0].mxu0 %v47
  %v271 = vpop.f32.mrb[0].mxu0
  %v272 = vadd.f32 0.0, %v271
  %v273 = vpop.f32.mrb[0].mxu0
  %v274 = vpop.f32.mrb[0].mxu0
  %v275 = vadd.f32 0.0, %v274
  %v276 = vpop.f32.mrb[0].mxu0
  %277 = vmatprep.mubr.bf16.mxu0 %v50
  %278 = vmatmul.mubr.bf16.gmra.mrb[0].mxu0 %v49
  %v279 = vpop.f32.mrb[0].mxu0
  %v280 = vadd.f32 0.0, %v279
  %v281 = vpop.f32.mrb[0].mxu0
  %v282 = vpop.f32.mrb[0].mxu0
  %v283 = vadd.f32 0.0, %v282
  %v284 = vpop.f32.mrb[0].mxu0
  %285 = vmatprep.mubr.bf16.mxu0 %v52
  %286 = vmatmul.mubr.bf16.gmra.mrb[0].mxu0 %v51
  %v287 = vpop.f32.mrb[0].mxu0
  %v288 = vadd.f32 0.0, %v287
  %v289 = vpop.f32.mrb[0].mxu0
  %v290 = vpop.f32.mrb[0].mxu0
  %v291 = vadd.f32 0.0, %v290
  %v292 = vpop.f32.mrb[0].mxu0
  %293 = vmatprep.mubr.bf16.mxu0 %v54
  %294 = vmatmul.mubr.bf16.gmra.mrb[0].mxu0 %v53
  %v295 = vpop.f32.mrb[0].mxu0
  %v296 = vadd.f32 0.0, %v295
  %v297 = vpop.f32.mrb[0].mxu0
  %v298 = vpop.f32.mrb[0].mxu0
  %v299 = vadd.f32 0.0, %v298
  %v300 = vpop.f32.mrb[0].mxu0
  %301 = vmatprep.mubr.bf16.mxu0 %v56
  %302 = vmatmul.mubr.bf16.gmra.mrb[0].mxu0 %v55
  %v303 = vpop.f32.mrb[0].mxu0
  %v304 = vadd.f32 0.0, %v303
  %v305 = vpop.f32.mrb[0].mxu0
  %v306 = vpop.f32.mrb[0].mxu0
  %v307 = vadd.f32 0.0, %v306
  %v308 = vpop.f32.mrb[0].mxu0
  %309 = vmatprep.mubr.bf16.mxu0 %v58
  %310 = vmatmul.mubr.bf16.gmra.mrb[0].mxu0 %v57
  %v311 = vpop.f32.mrb[0].mxu0
  %v312 = vadd.f32 0.0, %v311
  %v313 = vpop.f32.mrb[0].mxu0
  %v314 = vpop.f32.mrb[0].mxu0
  %v315 = vadd.f32 0.0, %v314
  %v316 = vpop.f32.mrb[0].mxu0
  %317 = vmatprep.mubr.bf16.mxu0 %v60
  %318 = vmatmul.mubr.bf16.gmra.mrb[0].mxu0 %v59
  %v319 = vpop.f32.mrb[0].mxu0
  %v320 = vadd.f32 0.0, %v319
  %v321 = vpop.f32.mrb[0].mxu0
  %v322 = vpop.f32.mrb[0].mxu0
  %v323 = vadd.f32 0.0, %v322
  %v324 = vpop.f32.mrb[0].mxu0
  %325 = vmatprep.mubr.bf16.mxu0 %v62
  %326 = vmatmul.mubr.bf16.gmra.mrb[0].mxu0 %v61
  %v327 = vpop.f32.mrb[0].mxu0
  %v328 = vadd.f32 0.0, %v327
  %v329 = vpop.f32.mrb[0].mxu0
  %v330 = vpop.f32.mrb[0].mxu0
  %v331 = vadd.f32 0.0, %v330
  %v332 = vpop.f32.mrb[0].mxu0
  %333 = vmatprep.mubr.bf16.mxu0 %v64
  %334 = vmatmul.mubr.bf16.gmra.mrb[0].mxu0 %v63
  %v335 = vpop.f32.mrb[0].mxu0
  %v336 = vadd.f32 0.0, %v335
  %v337 = vpop.f32.mrb[0].mxu0
  %v338 = vpop.f32.mrb[0].mxu0
  %v339 = vadd.f32 0.0, %v338
  %v340 = vpop.f32.mrb[0].mxu0
  %341 = vmatprep.mubr.bf16.mxu0 %v66
  %342 = vmatmul.mubr.bf16.gmra.mrb[0].mxu0 %v65
  %v343 = vpop.f32.mrb[0].mxu0
  %v344 = vadd.f32 0.0, %v343
  %v345 = vpop.f32.mrb[0].mxu0
  %v346 = vpop.f32.mrb[0].mxu0
  %v347 = vadd.f32 0.0, %v346
  %v348 = vpop.f32.mrb[0].mxu0
  %349 = vmatprep.mubr.bf16.mxu0 %v68
  %350 = vmatmul.mubr.bf16.gmra.mrb[0].mxu0 %v67
  %v351 = vpop.f32.mrb[0].mxu0
  %v352 = vadd.f32 0.0, %v351
  %v353 = vpop.f32.mrb[0].mxu0
  %v354 = vpop.f32.mrb[0].mxu0
  %v355 = vadd.f32 0.0, %v354
  %v356 = vpop.f32.mrb[0].mxu0
  %357 = vdwg.mxu0
  %v358 = vld [vmem:[%s2] sm:$0xff]
  %v359 = vld [vmem:[%s2 + $0x8] sm:$0xff]
  %v360 = vld [vmem:[%s2 + $0x10] sm:$0xff]
  %v361 = vld [vmem:[%s2 + $0x18] sm:$0xff]
  %v362 = vld [vmem:[%s2 + $0x20] sm:$0xff]
  %v363 = vld [vmem:[%s2 + $0x28] sm:$0xff]
  %v364 = vld [vmem:[%s2 + $0x30] sm:$0xff]
  %v365 = vld [vmem:[%s2 + $0x38] sm:$0xff]
  %v366 = vld [vmem:[%s2 + $0x40] sm:$0xff]
  %v367 = vld [vmem:[%s2 + $0x48] sm:$0xff]
  %v368 = vld [vmem:[%s2 + $0x50] sm:$0xff]
  %v369 = vld [vmem:[%s2 + $0x58] sm:$0xff]
  %v370 = vld [vmem:[%s2 + $0x60] sm:$0xff]
  %v371 = vld [vmem:[%s2 + $0x68] sm:$0xff]
  %v372 = vld [vmem:[%s2 + $0x70] sm:$0xff]
  %v373 = vld [vmem:[%s2 + $0x78] sm:$0xff]
  %v374 = vld [vmem:[%s2 + $0x80] sm:$0xff]
  %v375 = vld [vmem:[%s2 + $0x88] sm:$0xff]
  %v376 = vld [vmem:[%s2 + $0x90] sm:$0xff]
  %v377 = vld [vmem:[%s2 + $0x98] sm:$0xff]
  %v378 = vld [vmem:[%s2 + $0xa0] sm:$0xff]
  %v379 = vld [vmem:[%s2 + $0xa8] sm:$0xff]
  %v380 = vld [vmem:[%s2 + $0xb0] sm:$0xff]
  %v381 = vld [vmem:[%s2 + $0xb8] sm:$0xff]
  %v382 = vld [vmem:[%s2 + $0xc0] sm:$0xff]
  %v383 = vld [vmem:[%s2 + $0xc8] sm:$0xff]
  %v384 = vld [vmem:[%s2 + $0xd0] sm:$0xff]
  %v385 = vld [vmem:[%s2 + $0xd8] sm:$0xff]
  %v386 = vld [vmem:[%s2 + $0xe0] sm:$0xff]
  %v387 = vld [vmem:[%s2 + $0xe8] sm:$0xff]
  %v388 = vld [vmem:[%s2 + $0xf0] sm:$0xff]
  %v389 = vld [vmem:[%s2 + $0xf8] sm:$0xff]
  %391 = vset.pattern.permute.xlu0 0
  %392 = vperm.xlu0 %391, %v358
  %v393 = vpop.permute.xlu0 %392
  %396 = vset.pattern.permute.xlu0 0
  %397 = vperm.xlu0 %396, %v359
  %v398 = vpop.permute.xlu0 %397
  %401 = vset.pattern.permute.xlu0 0
  %402 = vperm.xlu0 %401, %v360
  %v403 = vpop.permute.xlu0 %402
  %406 = vset.pattern.permute.xlu0 0
  %407 = vperm.xlu0 %406, %v361
  %v408 = vpop.permute.xlu0 %407
  %411 = vset.pattern.permute.xlu0 0
  %412 = vperm.xlu0 %411, %v362
  %v413 = vpop.permute.xlu0 %412
  %416 = vset.pattern.permute.xlu0 0
  %417 = vperm.xlu0 %416, %v363
  %v418 = vpop.permute.xlu0 %417
  %421 = vset.pattern.permute.xlu0 0
  %422 = vperm.xlu0 %421, %v364
  %v423 = vpop.permute.xlu0 %422
  %426 = vset.pattern.permute.xlu0 0
  %427 = vperm.xlu0 %426, %v365
  %v428 = vpop.permute.xlu0 %427
  %431 = vset.pattern.permute.xlu0 0
  %432 = vperm.xlu0 %431, %v366
  %v433 = vpop.permute.xlu0 %432
  %436 = vset.pattern.permute.xlu0 0
  %437 = vperm.xlu0 %436, %v367
  %v438 = vpop.permute.xlu0 %437
  %441 = vset.pattern.permute.xlu0 0
  %442 = vperm.xlu0 %441, %v368
  %v443 = vpop.permute.xlu0 %442
  %446 = vset.pattern.permute.xlu0 0
  %447 = vperm.xlu0 %446, %v369
  %v448 = vpop.permute.xlu0 %447
  %451 = vset.pattern.permute.xlu0 0
  %452 = vperm.xlu0 %451, %v370
  %v453 = vpop.permute.xlu0 %452
  %456 = vset.pattern.permute.xlu0 0
  %457 = vperm.xlu0 %456, %v371
  %v458 = vpop.permute.xlu0 %457
  %461 = vset.pattern.permute.xlu0 0
  %462 = vperm.xlu0 %461, %v372
  %v463 = vpop.permute.xlu0 %462
  %466 = vset.pattern.permute.xlu0 0
  %467 = vperm.xlu0 %466, %v373
  %v468 = vpop.permute.xlu0 %467
  %471 = vset.pattern.permute.xlu0 0
  %472 = vperm.xlu0 %471, %v374
  %v473 = vpop.permute.xlu0 %472
  %476 = vset.pattern.permute.xlu0 0
  %477 = vperm.xlu0 %476, %v375
  %v478 = vpop.permute.xlu0 %477
  %481 = vset.pattern.permute.xlu0 0
  %482 = vperm.xlu0 %481, %v376
  %v483 = vpop.permute.xlu0 %482
  %486 = vset.pattern.permute.xlu0 0
  %487 = vperm.xlu0 %486, %v377
  %v488 = vpop.permute.xlu0 %487
  %491 = vset.pattern.permute.xlu0 0
  %492 = vperm.xlu0 %491, %v378
  %v493 = vpop.permute.xlu0 %492
  %496 = vset.pattern.permute.xlu0 0
  %497 = vperm.xlu0 %496, %v379
  %v498 = vpop.permute.xlu0 %497
  %501 = vset.pattern.permute.xlu0 0
  %502 = vperm.xlu0 %501, %v380
  %v503 = vpop.permute.xlu0 %502
  %506 = vset.pattern.permute.xlu0 0
  %507 = vperm.xlu0 %506, %v381
  %v508 = vpop.permute.xlu0 %507
  %511 = vset.pattern.permute.xlu0 0
  %512 = vperm.xlu0 %511, %v382
  %v513 = vpop.permute.xlu0 %512
  %516 = vset.pattern.permute.xlu0 0
  %517 = vperm.xlu0 %516, %v383
  %v518 = vpop.permute.xlu0 %517
  %521 = vset.pattern.permute.xlu0 0
  %522 = vperm.xlu0 %521, %v384
  %v523 = vpop.permute.xlu0 %522
  %526 = vset.pattern.permute.xlu0 0
  %527 = vperm.xlu0 %526, %v385
  %v528 = vpop.permute.xlu0 %527
  %531 = vset.pattern.permute.xlu0 0
  %532 = vperm.xlu0 %531, %v386
  %v533 = vpop.permute.xlu0 %532
  %536 = vset.pattern.permute.xlu0 0
  %537 = vperm.xlu0 %536, %v387
  %v538 = vpop.permute.xlu0 %537
  %541 = vset.pattern.permute.xlu0 0
  %542 = vperm.xlu0 %541, %v388
  %v543 = vpop.permute.xlu0 %542
  %546 = vset.pattern.permute.xlu0 0
  %547 = vperm.xlu0 %546, %v389
  %v548 = vpop.permute.xlu0 %547
  %v550 = vmul.f32 %v232, %v393
  %v551 = vmul.f32 %v235, %v398
  %v552 = vmul.f32 %v240, %v403
  %v553 = vmul.f32 %v243, %v408
  %v554 = vmul.f32 %v248, %v413
  %v555 = vmul.f32 %v251, %v418
  %v556 = vmul.f32 %v256, %v423
  %v557 = vmul.f32 %v259, %v428
  %v558 = vmul.f32 %v264, %v433
  %v559 = vmul.f32 %v267, %v438
  %v560 = vmul.f32 %v272, %v443
  %v561 = vmul.f32 %v275, %v448
  %v562 = vmul.f32 %v280, %v453
  %v563 = vmul.f32 %v283, %v458
  %v564 = vmul.f32 %v288, %v463
  %v565 = vmul.f32 %v291, %v468
  %v566 = vmul.f32 %v296, %v473
  %v567 = vmul.f32 %v299, %v478
  %v568 = vmul.f32 %v304, %v483
  %v569 = vmul.f32 %v307, %v488
  %v570 = vmul.f32 %v312, %v493
  %v571 = vmul.f32 %v315, %v498
  %v572 = vmul.f32 %v320, %v503
  %v573 = vmul.f32 %v323, %v508
  %v574 = vmul.f32 %v328, %v513
  %v575 = vmul.f32 %v331, %v518
  %v576 = vmul.f32 %v336, %v523
  %v577 = vmul.f32 %v339, %v528
  %v578 = vmul.f32 %v344, %v533
  %v579 = vmul.f32 %v347, %v538
  %v580 = vmul.f32 %v352, %v543
  %v581 = vmul.f32 %v355, %v548
  %v582 = vpack.c.bf16 %v551, %v550
  %v583 = vpack.c.bf16 %v553, %v552
  %v584 = vpack.c.bf16 %v555, %v554
  %v585 = vpack.c.bf16 %v557, %v556
  %v586 = vpack.c.bf16 %v559, %v558
  %v587 = vpack.c.bf16 %v561, %v560
  %v588 = vpack.c.bf16 %v563, %v562
  %v589 = vpack.c.bf16 %v565, %v564
  %v590 = vpack.c.bf16 %v567, %v566
  %v591 = vpack.c.bf16 %v569, %v568
  %v592 = vpack.c.bf16 %v571, %v570
  %v593 = vpack.c.bf16 %v573, %v572
  %v594 = vpack.c.bf16 %v575, %v574
  %v595 = vpack.c.bf16 %v577, %v576
  %v596 = vpack.c.bf16 %v579, %v578
  %v597 = vpack.c.bf16 %v581, %v580
  %v598 = vld [vmem:[%s3] sm:$0xf]
  %v599 = vld [vmem:[%s3 + $0x4] sm:$0xf]
  %v600 = vld [vmem:[%s3 + $0x8] sm:$0xf]
  %v601 = vld [vmem:[%s3 + $0xc] sm:$0xf]
  %v602 = vld [vmem:[%s3 + $0x10] sm:$0xf]
  %v603 = vld [vmem:[%s3 + $0x14] sm:$0xf]
  %v604 = vld [vmem:[%s3 + $0x18] sm:$0xf]
  %v605 = vld [vmem:[%s3 + $0x1c] sm:$0xf]
  %v606 = vld [vmem:[%s3 + $0x20] sm:$0xf]
  %v607 = vld [vmem:[%s3 + $0x24] sm:$0xf]
  %v608 = vld [vmem:[%s3 + $0x28] sm:$0xf]
  %v609 = vld [vmem:[%s3 + $0x2c] sm:$0xf]
  %v610 = vld [vmem:[%s3 + $0x30] sm:$0xf]
  %v611 = vld [vmem:[%s3 + $0x34] sm:$0xf]
  %v612 = vld [vmem:[%s3 + $0x38] sm:$0xf]
  %v613 = vld [vmem:[%s3 + $0x3c] sm:$0xf]
  %v614 = vld [vmem:[%s4] sm:$0x1]
  %v616 = vlaneseq
  %v617 = vshrl.u32 %v616, 7
  %v618 = vsub.s32 0, %v617
  %v619 = vrot.slane %v614, %v618
  %v637 = vunpack.c.l.b16 %v598
  %v638 = vunpack.c.l.b16 %v599
  %v639 = vunpack.c.l.b16 %v600
  %v640 = vunpack.c.l.b16 %v601
  %v641 = vunpack.c.l.b16 %v602
  %v642 = vunpack.c.l.b16 %v603
  %v643 = vunpack.c.l.b16 %v604
  %v644 = vunpack.c.l.b16 %v605
  %v645 = vunpack.c.l.b16 %v606
  %v646 = vunpack.c.l.b16 %v607
  %v647 = vunpack.c.l.b16 %v608
  %v648 = vunpack.c.l.b16 %v609
  %v649 = vunpack.c.l.b16 %v610
  %v650 = vunpack.c.l.b16 %v611
  %v651 = vunpack.c.l.b16 %v612
  %v652 = vunpack.c.l.b16 %v613
  %v653 = vpack.c.b16 %v638, %v637
  %v654 = vpack.c.b16 %v640, %v639
  %v655 = vpack.c.b16 %v642, %v641
  %v656 = vpack.c.b16 %v644, %v643
  %v657 = vpack.c.b16 %v646, %v645
  %v658 = vpack.c.b16 %v648, %v647
  %v659 = vpack.c.b16 %v650, %v649
  %v660 = vpack.c.b16 %v652, %v651
  %669 = vmatprep.subr.bf16.mxu0 0
  %670 = vmatpush1.bf16.msra.mxu0 %v653
  %671 = vmatprep.subr.bf16.mxu0 0
  %672 = vmatpush1.bf16.msra.mxu0 %v654
  %673 = vmatprep.subr.bf16.mxu0 0
  %674 = vmatpush1.bf16.msra.mxu0 %v655
  %675 = vmatprep.subr.bf16.mxu0 0
  %676 = vmatpush1.bf16.msra.mxu0 %v656
  %677 = vmatprep.subr.bf16.mxu0 0
  %678 = vmatpush1.bf16.msra.mxu0 %v657
  %679 = vmatprep.subr.bf16.mxu0 0
  %680 = vmatpush1.bf16.msra.mxu0 %v658
  %681 = vmatprep.subr.bf16.mxu0 0
  %682 = vmatpush1.bf16.msra.mxu0 %v659
  %683 = vmatprep.subr.bf16.mxu0 0
  %684 = vmatpush1.bf16.msra.mxu0 %v660
  %685 = vmatprep.subr.bf16.mxu0 0
  %686 = vmatpush1.bf16.msra.mxu0 0
  %687 = vmatprep.subr.bf16.mxu0 0
  %688 = vmatpush1.bf16.msra.mxu0 0
  %689 = vmatprep.subr.bf16.mxu0 0
  %690 = vmatpush1.bf16.msra.mxu0 0
  %691 = vmatprep.subr.bf16.mxu0 0
  %692 = vmatpush1.bf16.msra.mxu0 0
  %693 = vmatprep.subr.bf16.mxu0 0
  %694 = vmatpush1.bf16.msra.mxu0 0
  %695 = vmatprep.subr.bf16.mxu0 0
  %696 = vmatpush1.bf16.msra.mxu0 0
  %697 = vmatprep.subr.bf16.mxu0 0
  %698 = vmatpush1.bf16.msra.mxu0 0
  %699 = vmatprep.subr.bf16.mxu0 0
  %700 = vmatpush1.bf16.msra.mxu0 0
  %701 = vmatprep.mubr.bf16.mxu0 0
  %702 = vmatmul.mubr.bf16.gmra.mrb[0].mxu0 %v582
  %v703 = vpop.f32.mrb[0].mxu0
  %v704 = vadd.f32 %v619, %v703
  %v705 = vpop.f32.mrb[0].mxu0
  %v706 = vpop.f32.mrb[0].mxu0
  %v707 = vadd.f32 %v619, %v706
  %v708 = vpop.f32.mrb[0].mxu0
  %709 = vmatprep.mubr.bf16.mxu0 0
  %710 = vmatmul.mubr.bf16.gmra.mrb[0].mxu0 %v583
  %v711 = vpop.f32.mrb[0].mxu0
  %v712 = vadd.f32 %v619, %v711
  %v713 = vpop.f32.mrb[0].mxu0
  %v714 = vpop.f32.mrb[0].mxu0
  %v715 = vadd.f32 %v619, %v714
  %v716 = vpop.f32.mrb[0].mxu0
  %717 = vmatprep.mubr.bf16.mxu0 0
  %718 = vmatmul.mubr.bf16.gmra.mrb[0].mxu0 %v584
  %v719 = vpop.f32.mrb[0].mxu0
  %v720 = vadd.f32 %v619, %v719
  %v721 = vpop.f32.mrb[0].mxu0
  %v722 = vpop.f32.mrb[0].mxu0
  %v723 = vadd.f32 %v619, %v722
  %v724 = vpop.f32.mrb[0].mxu0
  %725 = vmatprep.mubr.bf16.mxu0 0
  %726 = vmatmul.mubr.bf16.gmra.mrb[0].mxu0 %v585
  %v727 = vpop.f32.mrb[0].mxu0
  %v728 = vadd.f32 %v619, %v727
  %v729 = vpop.f32.mrb[0].mxu0
  %v730 = vpop.f32.mrb[0].mxu0
  %v731 = vadd.f32 %v619, %v730
  %v732 = vpop.f32.mrb[0].mxu0
  %733 = vmatprep.mubr.bf16.mxu0 0
  %734 = vmatmul.mubr.bf16.gmra.mrb[0].mxu0 %v586
  %v735 = vpop.f32.mrb[0].mxu0
  %v736 = vadd.f32 %v619, %v735
  %v737 = vpop.f32.mrb[0].mxu0
  %v738 = vpop.f32.mrb[0].mxu0
  %v739 = vadd.f32 %v619, %v738
  %v740 = vpop.f32.mrb[0].mxu0
  %741 = vmatprep.mubr.bf16.mxu0 0
  %742 = vmatmul.mubr.bf16.gmra.mrb[0].mxu0 %v587
  %v743 = vpop.f32.mrb[0].mxu0
  %v744 = vadd.f32 %v619, %v743
  %v745 = vpop.f32.mrb[0].mxu0
  %v746 = vpop.f32.mrb[0].mxu0
  %v747 = vadd.f32 %v619, %v746
  %v748 = vpop.f32.mrb[0].mxu0
  %749 = vmatprep.mubr.bf16.mxu0 0
  %750 = vmatmul.mubr.bf16.gmra.mrb[0].mxu0 %v588
  %v751 = vpop.f32.mrb[0].mxu0
  %v752 = vadd.f32 %v619, %v751
  %v753 = vpop.f32.mrb[0].mxu0
  %v754 = vpop.f32.mrb[0].mxu0
  %v755 = vadd.f32 %v619, %v754
  %v756 = vpop.f32.mrb[0].mxu0
  %757 = vmatprep.mubr.bf16.mxu0 0
  %758 = vmatmul.mubr.bf16.gmra.mrb[0].mxu0 %v589
  %v759 = vpop.f32.mrb[0].mxu0
  %v760 = vadd.f32 %v619, %v759
  %v761 = vpop.f32.mrb[0].mxu0
  %v762 = vpop.f32.mrb[0].mxu0
  %v763 = vadd.f32 %v619, %v762
  %v764 = vpop.f32.mrb[0].mxu0
  %765 = vmatprep.mubr.bf16.mxu0 0
  %766 = vmatmul.mubr.bf16.gmra.mrb[0].mxu0 %v590
  %v767 = vpop.f32.mrb[0].mxu0
  %v768 = vadd.f32 %v619, %v767
  %v769 = vpop.f32.mrb[0].mxu0
  %v770 = vpop.f32.mrb[0].mxu0
  %v771 = vadd.f32 %v619, %v770
  %v772 = vpop.f32.mrb[0].mxu0
  %773 = vmatprep.mubr.bf16.mxu0 0
  %774 = vmatmul.mubr.bf16.gmra.mrb[0].mxu0 %v591
  %v775 = vpop.f32.mrb[0].mxu0
  %v776 = vadd.f32 %v619, %v775
  %v777 = vpop.f32.mrb[0].mxu0
  %v778 = vpop.f32.mrb[0].mxu0
  %v779 = vadd.f32 %v619, %v778
  %v780 = vpop.f32.mrb[0].mxu0
  %781 = vmatprep.mubr.bf16.mxu0 0
  %782 = vmatmul.mubr.bf16.gmra.mrb[0].mxu0 %v592
  %v783 = vpop.f32.mrb[0].mxu0
  %v784 = vadd.f32 %v619, %v783
  %v785 = vpop.f32.mrb[0].mxu0
  %v786 = vpop.f32.mrb[0].mxu0
  %v787 = vadd.f32 %v619, %v786
  %v788 = vpop.f32.mrb[0].mxu0
  %789 = vmatprep.mubr.bf16.mxu0 0
  %790 = vmatmul.mubr.bf16.gmra.mrb[0].mxu0 %v593
  %v791 = vpop.f32.mrb[0].mxu0
  %v792 = vadd.f32 %v619, %v791
  %v793 = vpop.f32.mrb[0].mxu0
  %v794 = vpop.f32.mrb[0].mxu0
  %v795 = vadd.f32 %v619, %v794
  %v796 = vpop.f32.mrb[0].mxu0
  %797 = vmatprep.mubr.bf16.mxu0 0
  %798 = vmatmul.mubr.bf16.gmra.mrb[0].mxu0 %v594
  %v799 = vpop.f32.mrb[0].mxu0
  %v800 = vadd.f32 %v619, %v799
  %v801 = vpop.f32.mrb[0].mxu0
  %v802 = vpop.f32.mrb[0].mxu0
  %v803 = vadd.f32 %v619, %v802
  %v804 = vpop.f32.mrb[0].mxu0
  %805 = vmatprep.mubr.bf16.mxu0 0
  %806 = vmatmul.mubr.bf16.gmra.mrb[0].mxu0 %v595
  %v807 = vpop.f32.mrb[0].mxu0
  %v808 = vadd.f32 %v619, %v807
  %v809 = vpop.f32.mrb[0].mxu0
  %v810 = vpop.f32.mrb[0].mxu0
  %v811 = vadd.f32 %v619, %v810
  %v812 = vpop.f32.mrb[0].mxu0
  %813 = vmatprep.mubr.bf16.mxu0 0
  %814 = vmatmul.mubr.bf16.gmra.mrb[0].mxu0 %v596
  %v815 = vpop.f32.mrb[0].mxu0
  %v816 = vadd.f32 %v619, %v815
  %v817 = vpop.f32.mrb[0].mxu0
  %v818 = vpop.f32.mrb[0].mxu0
  %v819 = vadd.f32 %v619, %v818
  %v820 = vpop.f32.mrb[0].mxu0
  %821 = vmatprep.mubr.bf16.mxu0 0
  %822 = vmatmul.mubr.bf16.gmra.mrb[0].mxu0 %v597
  %v823 = vpop.f32.mrb[0].mxu0
  %v824 = vadd.f32 %v619, %v823
  %v825 = vpop.f32.mrb[0].mxu0
  %v826 = vpop.f32.mrb[0].mxu0
  %v827 = vadd.f32 %v619, %v826
  %v828 = vpop.f32.mrb[0].mxu0
  %829 = vdwg.mxu0
  %v830 = vmax.f32 %v704, 0.0
  %v831 = vmax.f32 %v707, 0.0
  %v832 = vmax.f32 %v712, 0.0
  %v833 = vmax.f32 %v715, 0.0
  %v834 = vmax.f32 %v720, 0.0
  %v835 = vmax.f32 %v723, 0.0
  %v836 = vmax.f32 %v728, 0.0
  %v837 = vmax.f32 %v731, 0.0
  %v838 = vmax.f32 %v736, 0.0
  %v839 = vmax.f32 %v739, 0.0
  %v840 = vmax.f32 %v744, 0.0
  %v841 = vmax.f32 %v747, 0.0
  %v842 = vmax.f32 %v752, 0.0
  %v843 = vmax.f32 %v755, 0.0
  %v844 = vmax.f32 %v760, 0.0
  %v845 = vmax.f32 %v763, 0.0
  %v846 = vmax.f32 %v768, 0.0
  %v847 = vmax.f32 %v771, 0.0
  %v848 = vmax.f32 %v776, 0.0
  %v849 = vmax.f32 %v779, 0.0
  %v850 = vmax.f32 %v784, 0.0
  %v851 = vmax.f32 %v787, 0.0
  %v852 = vmax.f32 %v792, 0.0
  %v853 = vmax.f32 %v795, 0.0
  %v854 = vmax.f32 %v800, 0.0
  %v855 = vmax.f32 %v803, 0.0
  %v856 = vmax.f32 %v808, 0.0
  %v857 = vmax.f32 %v811, 0.0
  %v858 = vmax.f32 %v816, 0.0
  %v859 = vmax.f32 %v819, 0.0
  %v860 = vmax.f32 %v824, 0.0
  %v861 = vmax.f32 %v827, 0.0
  %v862 = vpack.c.bf16 %v831, %v830
  %v863 = vpack.c.bf16 %v833, %v832
  %v864 = vpack.c.bf16 %v835, %v834
  %v865 = vpack.c.bf16 %v837, %v836
  %v866 = vpack.c.bf16 %v839, %v838
  %v867 = vpack.c.bf16 %v841, %v840
  %v868 = vpack.c.bf16 %v843, %v842
  %v869 = vpack.c.bf16 %v845, %v844
  %v870 = vpack.c.bf16 %v847, %v846
  %v871 = vpack.c.bf16 %v849, %v848
  %v872 = vpack.c.bf16 %v851, %v850
  %v873 = vpack.c.bf16 %v853, %v852
  %v874 = vpack.c.bf16 %v855, %v854
  %v875 = vpack.c.bf16 %v857, %v856
  %v876 = vpack.c.bf16 %v859, %v858
  %v877 = vpack.c.bf16 %v861, %v860
  %v894 = vunpack.c.l.b16 %v862
  %v895 = vunpack.c.h.b16 %v862
  %v896 = vunpack.c.l.b16 %v863
  %v897 = vunpack.c.h.b16 %v863
  %v898 = vunpack.c.l.b16 %v864
  %v899 = vunpack.c.h.b16 %v864
  %v900 = vunpack.c.l.b16 %v865
  %v901 = vunpack.c.h.b16 %v865
  %v902 = vunpack.c.l.b16 %v866
  %v903 = vunpack.c.h.b16 %v866
  %v904 = vunpack.c.l.b16 %v867
  %v905 = vunpack.c.h.b16 %v867
  %v906 = vunpack.c.l.b16 %v868
  %v907 = vunpack.c.h.b16 %v868
  %v908 = vunpack.c.l.b16 %v869
  %v909 = vunpack.c.h.b16 %v869
  %v910 = vunpack.c.l.b16 %v870
  %v911 = vunpack.c.h.b16 %v870
  %v912 = vunpack.c.l.b16 %v871
  %v913 = vunpack.c.h.b16 %v871
  %v914 = vunpack.c.l.b16 %v872
  %v915 = vunpack.c.h.b16 %v872
  %v916 = vunpack.c.l.b16 %v873
  %v917 = vunpack.c.h.b16 %v873
  %v918 = vunpack.c.l.b16 %v874
  %v919 = vunpack.c.h.b16 %v874
  %v920 = vunpack.c.l.b16 %v875
  %v921 = vunpack.c.h.b16 %v875
  %v922 = vunpack.c.l.b16 %v876
  %v923 = vunpack.c.h.b16 %v876
  %v924 = vunpack.c.l.b16 %v877
  %v925 = vunpack.c.h.b16 %v877
  %v926 = vpack.c.b16 %v894, %v894
  %v927 = vpack.c.b16 %v895, %v895
  %v928 = vpack.c.b16 %v896, %v896
  %v929 = vpack.c.b16 %v897, %v897
  %v930 = vpack.c.b16 %v898, %v898
  %v931 = vpack.c.b16 %v899, %v899
  %v932 = vpack.c.b16 %v900, %v900
  %v933 = vpack.c.b16 %v901, %v901
  %v934 = vpack.c.b16 %v902, %v902
  %v935 = vpack.c.b16 %v903, %v903
  %v936 = vpack.c.b16 %v904, %v904
  %v937 = vpack.c.b16 %v905, %v905
  %v938 = vpack.c.b16 %v906, %v906
  %v939 = vpack.c.b16 %v907, %v907
  %v940 = vpack.c.b16 %v908, %v908
  %v941 = vpack.c.b16 %v909, %v909
  %v942 = vpack.c.b16 %v910, %v910
  %v943 = vpack.c.b16 %v911, %v911
  %v944 = vpack.c.b16 %v912, %v912
  %v945 = vpack.c.b16 %v913, %v913
  %v946 = vpack.c.b16 %v914, %v914
  %v947 = vpack.c.b16 %v915, %v915
  %v948 = vpack.c.b16 %v916, %v916
  %v949 = vpack.c.b16 %v917, %v917
  %v950 = vpack.c.b16 %v918, %v918
  %v951 = vpack.c.b16 %v919, %v919
  %v952 = vpack.c.b16 %v920, %v920
  %v953 = vpack.c.b16 %v921, %v921
  %v954 = vpack.c.b16 %v922, %v922
  %v955 = vpack.c.b16 %v923, %v923
  %v956 = vpack.c.b16 %v924, %v924
  %v957 = vpack.c.b16 %v925, %v925
  %990 = vst [vmem:[%s5] sm:$0xf] %v926
  %991 = vst [vmem:[%s5 + $0x4] sm:$0xf] %v927
  %992 = vst [vmem:[%s5 + $0x8] sm:$0xf] %v928
  %993 = vst [vmem:[%s5 + $0xc] sm:$0xf] %v929
  %994 = vst [vmem:[%s5 + $0x10] sm:$0xf] %v930
  %995 = vst [vmem:[%s5 + $0x14] sm:$0xf] %v931
  %996 = vst [vmem:[%s5 + $0x18] sm:$0xf] %v932
  %997 = vst [vmem:[%s5 + $0x1c] sm:$0xf] %v933
  %998 = vst [vmem:[%s5 + $0x20] sm:$0xf] %v934
  %999 = vst [vmem:[%s5 + $0x24] sm:$0xf] %v935
  %1000 = vst [vmem:[%s5 + $0x28] sm:$0xf] %v936
  %1001 = vst [vmem:[%s5 + $0x2c] sm:$0xf] %v937
  %1002 = vst [vmem:[%s5 + $0x30] sm:$0xf] %v938
  %1003 = vst [vmem:[%s5 + $0x34] sm:$0xf] %v939
  %1004 = vst [vmem:[%s5 + $0x38] sm:$0xf] %v940
  %1005 = vst [vmem:[%s5 + $0x3c] sm:$0xf] %v941
  %1006 = vst [vmem:[%s5 + $0x40] sm:$0xf] %v942
  %1007 = vst [vmem:[%s5 + $0x44] sm:$0xf] %v943
  %1008 = vst [vmem:[%s5 + $0x48] sm:$0xf] %v944
  %1009 = vst [vmem:[%s5 + $0x4c] sm:$0xf] %v945
  %1010 = vst [vmem:[%s5 + $0x50] sm:$0xf] %v946
  %1011 = vst [vmem:[%s5 + $0x54] sm:$0xf] %v947
  %1012 = vst [vmem:[%s5 + $0x58] sm:$0xf] %v948
  %1013 = vst [vmem:[%s5 + $0x5c] sm:$0xf] %v949
  %1014 = vst [vmem:[%s5 + $0x60] sm:$0xf] %v950
  %1015 = vst [vmem:[%s5 + $0x64] sm:$0xf] %v951
  %1016 = vst [vmem:[%s5 + $0x68] sm:$0xf] %v952
  %1017 = vst [vmem:[%s5 + $0x6c] sm:$0xf] %v953
  %1018 = vst [vmem:[%s5 + $0x70] sm:$0xf] %v954
  %1019 = vst [vmem:[%s5 + $0x74] sm:$0xf] %v955
  %1020 = vst [vmem:[%s5 + $0x78] sm:$0xf] %v956
  %1021 = vst [vmem:[%s5 + $0x7c] sm:$0xf] %v957
  // Predicated region
  $region22: #{gnn_forward.2} parent=0 // pred_check
    _
  $region23: #{gnn_forward.2} parent=0 // pred_check_branch
    %1023 = sbr.rel (0) target = $region25
  $region24: #{gnn_forward.2} parent=0 // pred_region
    _
  $region25: #{gnn_forward.2} parent=0 // pred_fallthru
    _
  // Predicated region
  $region26: #{gnn_forward.2} parent=0 // pred_check
    _
  $region27: #{gnn_forward.2} parent=0 // pred_check_branch
    %1025 = sbr.rel (0) target = $region29
  $region28: #{gnn_forward.2} parent=0 // pred_region
    _
  $region29: #{gnn_forward.2} parent=0 // pred_fallthru
    _

// kernel: gnn_forward.3
$region0: #{gnn_forward.3}
  #allocation0 [shape = 'u32[]', space=smem, size = 0x4, offset = 0x4, fixed_abs, tag = 'smem constant byte address 0x4 - core index']
  #allocation1 [shape = 'u32[144,128]{1,0:T(1,128)}', space=vmem, size = 0x12000, scoped, tag = 'internal scratch']
  %s0 = inlined_call_operand.vmem [shape: s8[256,256], index: 0, kind: input, shape index: {}]
  %s1 = inlined_call_operand.vmem [shape: bf16[256,128], index: 1, kind: input, shape index: {}]
  %s2 = inlined_call_operand.vmem [shape: f32[256,1], index: 2, kind: input, shape index: {}]
  %s3 = inlined_call_operand.vmem [shape: bf16[128,128], index: 3, kind: input, shape index: {}]
  %s4 = inlined_call_operand.vmem [shape: f32[1,128], index: 4, kind: input, shape index: {}]
  %s5 = inlined_call_operand.vmem [shape: f32[256,128], index: 5, kind: output, shape index: {}]
  %s6 = sld [smem:[#allocation0]]
  $region30: #{gnn_forward.3} parent=0
    _
  %s8 = ssub.s32 1, %s6
  %s9 = scalar_select 0, %s8, %s6
  // Predicated region
  $region2: #{gnn_forward.3} parent=0 // pred_check
    _
  $region3: #{gnn_forward.3} parent=0 // pred_check_branch
    %11 = sbr.rel (0) target = $region5
  $region4: #{gnn_forward.3} parent=0 // pred_region
    _
  $region5: #{gnn_forward.3} parent=0 // pred_fallthru
    _
  // Predicated region
  $region6: #{gnn_forward.3} parent=0 // pred_check
    _
  $region7: #{gnn_forward.3} parent=0 // pred_check_branch
    %13 = sbr.rel (0) target = $region9
  $region8: #{gnn_forward.3} parent=0 // pred_region
    _
  $region9: #{gnn_forward.3} parent=0 // pred_fallthru
    _
  // Predicated region
  $region10: #{gnn_forward.3} parent=0 // pred_check
    _
  $region11: #{gnn_forward.3} parent=0 // pred_check_branch
    %15 = sbr.rel (0) target = $region13
  $region12: #{gnn_forward.3} parent=0 // pred_region
    _
  $region13: #{gnn_forward.3} parent=0 // pred_fallthru
    _
  // Predicated region
  $region14: #{gnn_forward.3} parent=0 // pred_check
    _
  $region15: #{gnn_forward.3} parent=0 // pred_check_branch
    %17 = sbr.rel (0) target = $region17
  $region16: #{gnn_forward.3} parent=0 // pred_region
    _
  $region17: #{gnn_forward.3} parent=0 // pred_fallthru
    _
  // Predicated region
  $region18: #{gnn_forward.3} parent=0 // pred_check
    _
  $region19: #{gnn_forward.3} parent=0 // pred_check_branch
    %19 = sbr.rel (0) target = $region21
  $region20: #{gnn_forward.3} parent=0 // pred_region
    _
  $region21: #{gnn_forward.3} parent=0 // pred_fallthru
    _
  %v21 = vld [vmem:[%s0] sm:$0xff]
  %v22 = vld [vmem:[%s0 + $0x8] sm:$0xff]
  %v23 = vld [vmem:[%s0 + $0x10] sm:$0xff]
  %v24 = vld [vmem:[%s0 + $0x18] sm:$0xff]
  %v25 = vld [vmem:[%s0 + $0x20] sm:$0xff]
  %v26 = vld [vmem:[%s0 + $0x28] sm:$0xff]
  %v27 = vld [vmem:[%s0 + $0x30] sm:$0xff]
  %v28 = vld [vmem:[%s0 + $0x38] sm:$0xff]
  %v29 = vld [vmem:[%s0 + $0x40] sm:$0xff]
  %v30 = vld [vmem:[%s0 + $0x48] sm:$0xff]
  %v31 = vld [vmem:[%s0 + $0x50] sm:$0xff]
  %v32 = vld [vmem:[%s0 + $0x58] sm:$0xff]
  %v33 = vld [vmem:[%s0 + $0x60] sm:$0xff]
  %v34 = vld [vmem:[%s0 + $0x68] sm:$0xff]
  %v35 = vld [vmem:[%s0 + $0x70] sm:$0xff]
  %v36 = vld [vmem:[%s0 + $0x78] sm:$0xff]
  %v37 = vunpack.c.l.s8.bf16 %v21
  %v38 = vunpack.c.l.s8.bf16 %v22
  %v39 = vunpack.c.h.s8.bf16 %v21
  %v40 = vunpack.c.h.s8.bf16 %v22
  %v41 = vunpack.c.l.s8.bf16 %v23
  %v42 = vunpack.c.l.s8.bf16 %v24
  %v43 = vunpack.c.h.s8.bf16 %v23
  %v44 = vunpack.c.h.s8.bf16 %v24
  %v45 = vunpack.c.l.s8.bf16 %v25
  %v46 = vunpack.c.l.s8.bf16 %v26
  %v47 = vunpack.c.h.s8.bf16 %v25
  %v48 = vunpack.c.h.s8.bf16 %v26
  %v49 = vunpack.c.l.s8.bf16 %v27
  %v50 = vunpack.c.l.s8.bf16 %v28
  %v51 = vunpack.c.h.s8.bf16 %v27
  %v52 = vunpack.c.h.s8.bf16 %v28
  %v53 = vunpack.c.l.s8.bf16 %v29
  %v54 = vunpack.c.l.s8.bf16 %v30
  %v55 = vunpack.c.h.s8.bf16 %v29
  %v56 = vunpack.c.h.s8.bf16 %v30
  %v57 = vunpack.c.l.s8.bf16 %v31
  %v58 = vunpack.c.l.s8.bf16 %v32
  %v59 = vunpack.c.h.s8.bf16 %v31
  %v60 = vunpack.c.h.s8.bf16 %v32
  %v61 = vunpack.c.l.s8.bf16 %v33
  %v62 = vunpack.c.l.s8.bf16 %v34
  %v63 = vunpack.c.h.s8.bf16 %v33
  %v64 = vunpack.c.h.s8.bf16 %v34
  %v65 = vunpack.c.l.s8.bf16 %v35
  %v66 = vunpack.c.l.s8.bf16 %v36
  %v67 = vunpack.c.h.s8.bf16 %v35
  %v68 = vunpack.c.h.s8.bf16 %v36
  %v69 = vld [vmem:[%s1] sm:$0xf]
  %v70 = vld [vmem:[%s1 + $0x4] sm:$0xf]
  %v71 = vld [vmem:[%s1 + $0x8] sm:$0xf]
  %v72 = vld [vmem:[%s1 + $0xc] sm:$0xf]
  %v73 = vld [vmem:[%s1 + $0x10] sm:$0xf]
  %v74 = vld [vmem:[%s1 + $0x14] sm:$0xf]
  %v75 = vld [vmem:[%s1 + $0x18] sm:$0xf]
  %v76 = vld [vmem:[%s1 + $0x1c] sm:$0xf]
  %v77 = vld [vmem:[%s1 + $0x20] sm:$0xf]
  %v78 = vld [vmem:[%s1 + $0x24] sm:$0xf]
  %v79 = vld [vmem:[%s1 + $0x28] sm:$0xf]
  %v80 = vld [vmem:[%s1 + $0x2c] sm:$0xf]
  %v81 = vld [vmem:[%s1 + $0x30] sm:$0xf]
  %v82 = vld [vmem:[%s1 + $0x34] sm:$0xf]
  %v83 = vld [vmem:[%s1 + $0x38] sm:$0xf]
  %v84 = vld [vmem:[%s1 + $0x3c] sm:$0xf]
  %v85 = vld [vmem:[%s1 + $0x40] sm:$0xf]
  %v86 = vld [vmem:[%s1 + $0x44] sm:$0xf]
  %v87 = vld [vmem:[%s1 + $0x48] sm:$0xf]
  %v88 = vld [vmem:[%s1 + $0x4c] sm:$0xf]
  %v89 = vld [vmem:[%s1 + $0x50] sm:$0xf]
  %v90 = vld [vmem:[%s1 + $0x54] sm:$0xf]
  %v91 = vld [vmem:[%s1 + $0x58] sm:$0xf]
  %v92 = vld [vmem:[%s1 + $0x5c] sm:$0xf]
  %v93 = vld [vmem:[%s1 + $0x60] sm:$0xf]
  %v94 = vld [vmem:[%s1 + $0x64] sm:$0xf]
  %v95 = vld [vmem:[%s1 + $0x68] sm:$0xf]
  %v96 = vld [vmem:[%s1 + $0x6c] sm:$0xf]
  %v97 = vld [vmem:[%s1 + $0x70] sm:$0xf]
  %v98 = vld [vmem:[%s1 + $0x74] sm:$0xf]
  %v99 = vld [vmem:[%s1 + $0x78] sm:$0xf]
  %v100 = vld [vmem:[%s1 + $0x7c] sm:$0xf]
  %v133 = vunpack.c.l.b16 %v69
  %v134 = vunpack.c.l.b16 %v70
  %v135 = vunpack.c.l.b16 %v71
  %v136 = vunpack.c.l.b16 %v72
  %v137 = vunpack.c.l.b16 %v73
  %v138 = vunpack.c.l.b16 %v74
  %v139 = vunpack.c.l.b16 %v75
  %v140 = vunpack.c.l.b16 %v76
  %v141 = vunpack.c.l.b16 %v77
  %v142 = vunpack.c.l.b16 %v78
  %v143 = vunpack.c.l.b16 %v79
  %v144 = vunpack.c.l.b16 %v80
  %v145 = vunpack.c.l.b16 %v81
  %v146 = vunpack.c.l.b16 %v82
  %v147 = vunpack.c.l.b16 %v83
  %v148 = vunpack.c.l.b16 %v84
  %v149 = vunpack.c.l.b16 %v85
  %v150 = vunpack.c.l.b16 %v86
  %v151 = vunpack.c.l.b16 %v87
  %v152 = vunpack.c.l.b16 %v88
  %v153 = vunpack.c.l.b16 %v89
  %v154 = vunpack.c.l.b16 %v90
  %v155 = vunpack.c.l.b16 %v91
  %v156 = vunpack.c.l.b16 %v92
  %v157 = vunpack.c.l.b16 %v93
  %v158 = vunpack.c.l.b16 %v94
  %v159 = vunpack.c.l.b16 %v95
  %v160 = vunpack.c.l.b16 %v96
  %v161 = vunpack.c.l.b16 %v97
  %v162 = vunpack.c.l.b16 %v98
  %v163 = vunpack.c.l.b16 %v99
  %v164 = vunpack.c.l.b16 %v100
  %v165 = vpack.c.b16 %v134, %v133
  %v166 = vpack.c.b16 %v136, %v135
  %v167 = vpack.c.b16 %v138, %v137
  %v168 = vpack.c.b16 %v140, %v139
  %v169 = vpack.c.b16 %v142, %v141
  %v170 = vpack.c.b16 %v144, %v143
  %v171 = vpack.c.b16 %v146, %v145
  %v172 = vpack.c.b16 %v148, %v147
  %v173 = vpack.c.b16 %v150, %v149
  %v174 = vpack.c.b16 %v152, %v151
  %v175 = vpack.c.b16 %v154, %v153
  %v176 = vpack.c.b16 %v156, %v155
  %v177 = vpack.c.b16 %v158, %v157
  %v178 = vpack.c.b16 %v160, %v159
  %v179 = vpack.c.b16 %v162, %v161
  %v180 = vpack.c.b16 %v164, %v163
  %197 = vmatprep.subr.bf16.mxu0 0
  %198 = vmatpush1.bf16.msra.mxu0 %v165
  %199 = vmatprep.subr.bf16.mxu0 0
  %200 = vmatpush1.bf16.msra.mxu0 %v166
  %201 = vmatprep.subr.bf16.mxu0 0
  %202 = vmatpush1.bf16.msra.mxu0 %v167
  %203 = vmatprep.subr.bf16.mxu0 0
  %204 = vmatpush1.bf16.msra.mxu0 %v168
  %205 = vmatprep.subr.bf16.mxu0 0
  %206 = vmatpush1.bf16.msra.mxu0 %v169
  %207 = vmatprep.subr.bf16.mxu0 0
  %208 = vmatpush1.bf16.msra.mxu0 %v170
  %209 = vmatprep.subr.bf16.mxu0 0
  %210 = vmatpush1.bf16.msra.mxu0 %v171
  %211 = vmatprep.subr.bf16.mxu0 0
  %212 = vmatpush1.bf16.msra.mxu0 %v172
  %213 = vmatprep.subr.bf16.mxu0 0
  %214 = vmatpush1.bf16.msra.mxu0 %v173
  %215 = vmatprep.subr.bf16.mxu0 0
  %216 = vmatpush1.bf16.msra.mxu0 %v174
  %217 = vmatprep.subr.bf16.mxu0 0
  %218 = vmatpush1.bf16.msra.mxu0 %v175
  %219 = vmatprep.subr.bf16.mxu0 0
  %220 = vmatpush1.bf16.msra.mxu0 %v176
  %221 = vmatprep.subr.bf16.mxu0 0
  %222 = vmatpush1.bf16.msra.mxu0 %v177
  %223 = vmatprep.subr.bf16.mxu0 0
  %224 = vmatpush1.bf16.msra.mxu0 %v178
  %225 = vmatprep.subr.bf16.mxu0 0
  %226 = vmatpush1.bf16.msra.mxu0 %v179
  %227 = vmatprep.subr.bf16.mxu0 0
  %228 = vmatpush1.bf16.msra.mxu0 %v180
  %229 = vmatprep.mubr.bf16.mxu0 %v38
  %230 = vmatmul.mubr.bf16.gmra.mrb[0].mxu0 %v37
  %v231 = vpop.f32.mrb[0].mxu0
  %v232 = vadd.f32 0.0, %v231
  %v233 = vpop.f32.mrb[0].mxu0
  %v234 = vpop.f32.mrb[0].mxu0
  %v235 = vadd.f32 0.0, %v234
  %v236 = vpop.f32.mrb[0].mxu0
  %237 = vmatprep.mubr.bf16.mxu0 %v40
  %238 = vmatmul.mubr.bf16.gmra.mrb[0].mxu0 %v39
  %v239 = vpop.f32.mrb[0].mxu0
  %v240 = vadd.f32 0.0, %v239
  %v241 = vpop.f32.mrb[0].mxu0
  %v242 = vpop.f32.mrb[0].mxu0
  %v243 = vadd.f32 0.0, %v242
  %v244 = vpop.f32.mrb[0].mxu0
  %245 = vmatprep.mubr.bf16.mxu0 %v42
  %246 = vmatmul.mubr.bf16.gmra.mrb[0].mxu0 %v41
  %v247 = vpop.f32.mrb[0].mxu0
  %v248 = vadd.f32 0.0, %v247
  %v249 = vpop.f32.mrb[0].mxu0
  %v250 = vpop.f32.mrb[0].mxu0
  %v251 = vadd.f32 0.0, %v250
  %v252 = vpop.f32.mrb[0].mxu0
  %253 = vmatprep.mubr.bf16.mxu0 %v44
  %254 = vmatmul.mubr.bf16.gmra.mrb[0].mxu0 %v43
  %v255 = vpop.f32.mrb[0].mxu0
  %v256 = vadd.f32 0.0, %v255
  %v257 = vpop.f32.mrb[0].mxu0
  %v258 = vpop.f32.mrb[0].mxu0
  %v259 = vadd.f32 0.0, %v258
  %v260 = vpop.f32.mrb[0].mxu0
  %261 = vmatprep.mubr.bf16.mxu0 %v46
  %262 = vmatmul.mubr.bf16.gmra.mrb[0].mxu0 %v45
  %v263 = vpop.f32.mrb[0].mxu0
  %v264 = vadd.f32 0.0, %v263
  %v265 = vpop.f32.mrb[0].mxu0
  %v266 = vpop.f32.mrb[0].mxu0
  %v267 = vadd.f32 0.0, %v266
  %v268 = vpop.f32.mrb[0].mxu0
  %269 = vmatprep.mubr.bf16.mxu0 %v48
  %270 = vmatmul.mubr.bf16.gmra.mrb[0].mxu0 %v47
  %v271 = vpop.f32.mrb[0].mxu0
  %v272 = vadd.f32 0.0, %v271
  %v273 = vpop.f32.mrb[0].mxu0
  %v274 = vpop.f32.mrb[0].mxu0
  %v275 = vadd.f32 0.0, %v274
  %v276 = vpop.f32.mrb[0].mxu0
  %277 = vmatprep.mubr.bf16.mxu0 %v50
  %278 = vmatmul.mubr.bf16.gmra.mrb[0].mxu0 %v49
  %v279 = vpop.f32.mrb[0].mxu0
  %v280 = vadd.f32 0.0, %v279
  %v281 = vpop.f32.mrb[0].mxu0
  %v282 = vpop.f32.mrb[0].mxu0
  %v283 = vadd.f32 0.0, %v282
  %v284 = vpop.f32.mrb[0].mxu0
  %285 = vmatprep.mubr.bf16.mxu0 %v52
  %286 = vmatmul.mubr.bf16.gmra.mrb[0].mxu0 %v51
  %v287 = vpop.f32.mrb[0].mxu0
  %v288 = vadd.f32 0.0, %v287
  %v289 = vpop.f32.mrb[0].mxu0
  %v290 = vpop.f32.mrb[0].mxu0
  %v291 = vadd.f32 0.0, %v290
  %v292 = vpop.f32.mrb[0].mxu0
  %293 = vmatprep.mubr.bf16.mxu0 %v54
  %294 = vmatmul.mubr.bf16.gmra.mrb[0].mxu0 %v53
  %v295 = vpop.f32.mrb[0].mxu0
  %v296 = vadd.f32 0.0, %v295
  %v297 = vpop.f32.mrb[0].mxu0
  %v298 = vpop.f32.mrb[0].mxu0
  %v299 = vadd.f32 0.0, %v298
  %v300 = vpop.f32.mrb[0].mxu0
  %301 = vmatprep.mubr.bf16.mxu0 %v56
  %302 = vmatmul.mubr.bf16.gmra.mrb[0].mxu0 %v55
  %v303 = vpop.f32.mrb[0].mxu0
  %v304 = vadd.f32 0.0, %v303
  %v305 = vpop.f32.mrb[0].mxu0
  %v306 = vpop.f32.mrb[0].mxu0
  %v307 = vadd.f32 0.0, %v306
  %v308 = vpop.f32.mrb[0].mxu0
  %309 = vmatprep.mubr.bf16.mxu0 %v58
  %310 = vmatmul.mubr.bf16.gmra.mrb[0].mxu0 %v57
  %v311 = vpop.f32.mrb[0].mxu0
  %v312 = vadd.f32 0.0, %v311
  %v313 = vpop.f32.mrb[0].mxu0
  %v314 = vpop.f32.mrb[0].mxu0
  %v315 = vadd.f32 0.0, %v314
  %v316 = vpop.f32.mrb[0].mxu0
  %317 = vmatprep.mubr.bf16.mxu0 %v60
  %318 = vmatmul.mubr.bf16.gmra.mrb[0].mxu0 %v59
  %v319 = vpop.f32.mrb[0].mxu0
  %v320 = vadd.f32 0.0, %v319
  %v321 = vpop.f32.mrb[0].mxu0
  %v322 = vpop.f32.mrb[0].mxu0
  %v323 = vadd.f32 0.0, %v322
  %v324 = vpop.f32.mrb[0].mxu0
  %325 = vmatprep.mubr.bf16.mxu0 %v62
  %326 = vmatmul.mubr.bf16.gmra.mrb[0].mxu0 %v61
  %v327 = vpop.f32.mrb[0].mxu0
  %v328 = vadd.f32 0.0, %v327
  %v329 = vpop.f32.mrb[0].mxu0
  %v330 = vpop.f32.mrb[0].mxu0
  %v331 = vadd.f32 0.0, %v330
  %v332 = vpop.f32.mrb[0].mxu0
  %333 = vmatprep.mubr.bf16.mxu0 %v64
  %334 = vmatmul.mubr.bf16.gmra.mrb[0].mxu0 %v63
  %v335 = vpop.f32.mrb[0].mxu0
  %v336 = vadd.f32 0.0, %v335
  %v337 = vpop.f32.mrb[0].mxu0
  %v338 = vpop.f32.mrb[0].mxu0
  %v339 = vadd.f32 0.0, %v338
  %v340 = vpop.f32.mrb[0].mxu0
  %341 = vmatprep.mubr.bf16.mxu0 %v66
  %342 = vmatmul.mubr.bf16.gmra.mrb[0].mxu0 %v65
  %v343 = vpop.f32.mrb[0].mxu0
  %v344 = vadd.f32 0.0, %v343
  %v345 = vpop.f32.mrb[0].mxu0
  %v346 = vpop.f32.mrb[0].mxu0
  %v347 = vadd.f32 0.0, %v346
  %v348 = vpop.f32.mrb[0].mxu0
  %349 = vmatprep.mubr.bf16.mxu0 %v68
  %350 = vmatmul.mubr.bf16.gmra.mrb[0].mxu0 %v67
  %v351 = vpop.f32.mrb[0].mxu0
  %v352 = vadd.f32 0.0, %v351
  %v353 = vpop.f32.mrb[0].mxu0
  %v354 = vpop.f32.mrb[0].mxu0
  %v355 = vadd.f32 0.0, %v354
  %v356 = vpop.f32.mrb[0].mxu0
  %357 = vdwg.mxu0
  %v358 = vld [vmem:[%s2] sm:$0xff]
  %v359 = vld [vmem:[%s2 + $0x8] sm:$0xff]
  %v360 = vld [vmem:[%s2 + $0x10] sm:$0xff]
  %v361 = vld [vmem:[%s2 + $0x18] sm:$0xff]
  %v362 = vld [vmem:[%s2 + $0x20] sm:$0xff]
  %v363 = vld [vmem:[%s2 + $0x28] sm:$0xff]
  %v364 = vld [vmem:[%s2 + $0x30] sm:$0xff]
  %v365 = vld [vmem:[%s2 + $0x38] sm:$0xff]
  %v366 = vld [vmem:[%s2 + $0x40] sm:$0xff]
  %v367 = vld [vmem:[%s2 + $0x48] sm:$0xff]
  %v368 = vld [vmem:[%s2 + $0x50] sm:$0xff]
  %v369 = vld [vmem:[%s2 + $0x58] sm:$0xff]
  %v370 = vld [vmem:[%s2 + $0x60] sm:$0xff]
  %v371 = vld [vmem:[%s2 + $0x68] sm:$0xff]
  %v372 = vld [vmem:[%s2 + $0x70] sm:$0xff]
  %v373 = vld [vmem:[%s2 + $0x78] sm:$0xff]
  %v374 = vld [vmem:[%s2 + $0x80] sm:$0xff]
  %v375 = vld [vmem:[%s2 + $0x88] sm:$0xff]
  %v376 = vld [vmem:[%s2 + $0x90] sm:$0xff]
  %v377 = vld [vmem:[%s2 + $0x98] sm:$0xff]
  %v378 = vld [vmem:[%s2 + $0xa0] sm:$0xff]
  %v379 = vld [vmem:[%s2 + $0xa8] sm:$0xff]
  %v380 = vld [vmem:[%s2 + $0xb0] sm:$0xff]
  %v381 = vld [vmem:[%s2 + $0xb8] sm:$0xff]
  %v382 = vld [vmem:[%s2 + $0xc0] sm:$0xff]
  %v383 = vld [vmem:[%s2 + $0xc8] sm:$0xff]
  %v384 = vld [vmem:[%s2 + $0xd0] sm:$0xff]
  %v385 = vld [vmem:[%s2 + $0xd8] sm:$0xff]
  %v386 = vld [vmem:[%s2 + $0xe0] sm:$0xff]
  %v387 = vld [vmem:[%s2 + $0xe8] sm:$0xff]
  %v388 = vld [vmem:[%s2 + $0xf0] sm:$0xff]
  %v389 = vld [vmem:[%s2 + $0xf8] sm:$0xff]
  %391 = vset.pattern.permute.xlu0 0
  %392 = vperm.xlu0 %391, %v358
  %v393 = vpop.permute.xlu0 %392
  %396 = vset.pattern.permute.xlu0 0
  %397 = vperm.xlu0 %396, %v359
  %v398 = vpop.permute.xlu0 %397
  %401 = vset.pattern.permute.xlu0 0
  %402 = vperm.xlu0 %401, %v360
  %v403 = vpop.permute.xlu0 %402
  %406 = vset.pattern.permute.xlu0 0
  %407 = vperm.xlu0 %406, %v361
  %v408 = vpop.permute.xlu0 %407
  %411 = vset.pattern.permute.xlu0 0
  %412 = vperm.xlu0 %411, %v362
  %v413 = vpop.permute.xlu0 %412
  %416 = vset.pattern.permute.xlu0 0
  %417 = vperm.xlu0 %416, %v363
  %v418 = vpop.permute.xlu0 %417
  %421 = vset.pattern.permute.xlu0 0
  %422 = vperm.xlu0 %421, %v364
  %v423 = vpop.permute.xlu0 %422
  %426 = vset.pattern.permute.xlu0 0
  %427 = vperm.xlu0 %426, %v365
  %v428 = vpop.permute.xlu0 %427
  %431 = vset.pattern.permute.xlu0 0
  %432 = vperm.xlu0 %431, %v366
  %v433 = vpop.permute.xlu0 %432
  %436 = vset.pattern.permute.xlu0 0
  %437 = vperm.xlu0 %436, %v367
  %v438 = vpop.permute.xlu0 %437
  %441 = vset.pattern.permute.xlu0 0
  %442 = vperm.xlu0 %441, %v368
  %v443 = vpop.permute.xlu0 %442
  %446 = vset.pattern.permute.xlu0 0
  %447 = vperm.xlu0 %446, %v369
  %v448 = vpop.permute.xlu0 %447
  %451 = vset.pattern.permute.xlu0 0
  %452 = vperm.xlu0 %451, %v370
  %v453 = vpop.permute.xlu0 %452
  %456 = vset.pattern.permute.xlu0 0
  %457 = vperm.xlu0 %456, %v371
  %v458 = vpop.permute.xlu0 %457
  %461 = vset.pattern.permute.xlu0 0
  %462 = vperm.xlu0 %461, %v372
  %v463 = vpop.permute.xlu0 %462
  %466 = vset.pattern.permute.xlu0 0
  %467 = vperm.xlu0 %466, %v373
  %v468 = vpop.permute.xlu0 %467
  %471 = vset.pattern.permute.xlu0 0
  %472 = vperm.xlu0 %471, %v374
  %v473 = vpop.permute.xlu0 %472
  %476 = vset.pattern.permute.xlu0 0
  %477 = vperm.xlu0 %476, %v375
  %v478 = vpop.permute.xlu0 %477
  %481 = vset.pattern.permute.xlu0 0
  %482 = vperm.xlu0 %481, %v376
  %v483 = vpop.permute.xlu0 %482
  %486 = vset.pattern.permute.xlu0 0
  %487 = vperm.xlu0 %486, %v377
  %v488 = vpop.permute.xlu0 %487
  %491 = vset.pattern.permute.xlu0 0
  %492 = vperm.xlu0 %491, %v378
  %v493 = vpop.permute.xlu0 %492
  %496 = vset.pattern.permute.xlu0 0
  %497 = vperm.xlu0 %496, %v379
  %v498 = vpop.permute.xlu0 %497
  %501 = vset.pattern.permute.xlu0 0
  %502 = vperm.xlu0 %501, %v380
  %v503 = vpop.permute.xlu0 %502
  %506 = vset.pattern.permute.xlu0 0
  %507 = vperm.xlu0 %506, %v381
  %v508 = vpop.permute.xlu0 %507
  %511 = vset.pattern.permute.xlu0 0
  %512 = vperm.xlu0 %511, %v382
  %v513 = vpop.permute.xlu0 %512
  %516 = vset.pattern.permute.xlu0 0
  %517 = vperm.xlu0 %516, %v383
  %v518 = vpop.permute.xlu0 %517
  %521 = vset.pattern.permute.xlu0 0
  %522 = vperm.xlu0 %521, %v384
  %v523 = vpop.permute.xlu0 %522
  %526 = vset.pattern.permute.xlu0 0
  %527 = vperm.xlu0 %526, %v385
  %v528 = vpop.permute.xlu0 %527
  %531 = vset.pattern.permute.xlu0 0
  %532 = vperm.xlu0 %531, %v386
  %v533 = vpop.permute.xlu0 %532
  %536 = vset.pattern.permute.xlu0 0
  %537 = vperm.xlu0 %536, %v387
  %v538 = vpop.permute.xlu0 %537
  %541 = vset.pattern.permute.xlu0 0
  %542 = vperm.xlu0 %541, %v388
  %v543 = vpop.permute.xlu0 %542
  %546 = vset.pattern.permute.xlu0 0
  %547 = vperm.xlu0 %546, %v389
  %v548 = vpop.permute.xlu0 %547
  %v550 = vmul.f32 %v232, %v393
  %v551 = vmul.f32 %v235, %v398
  %v552 = vmul.f32 %v240, %v403
  %v553 = vmul.f32 %v243, %v408
  %v554 = vmul.f32 %v248, %v413
  %v555 = vmul.f32 %v251, %v418
  %v556 = vmul.f32 %v256, %v423
  %v557 = vmul.f32 %v259, %v428
  %v558 = vmul.f32 %v264, %v433
  %v559 = vmul.f32 %v267, %v438
  %v560 = vmul.f32 %v272, %v443
  %v561 = vmul.f32 %v275, %v448
  %v562 = vmul.f32 %v280, %v453
  %v563 = vmul.f32 %v283, %v458
  %v564 = vmul.f32 %v288, %v463
  %v565 = vmul.f32 %v291, %v468
  %v566 = vmul.f32 %v296, %v473
  %v567 = vmul.f32 %v299, %v478
  %v568 = vmul.f32 %v304, %v483
  %v569 = vmul.f32 %v307, %v488
  %v570 = vmul.f32 %v312, %v493
  %v571 = vmul.f32 %v315, %v498
  %v572 = vmul.f32 %v320, %v503
  %v573 = vmul.f32 %v323, %v508
  %v574 = vmul.f32 %v328, %v513
  %v575 = vmul.f32 %v331, %v518
  %v576 = vmul.f32 %v336, %v523
  %v577 = vmul.f32 %v339, %v528
  %v578 = vmul.f32 %v344, %v533
  %v579 = vmul.f32 %v347, %v538
  %v580 = vmul.f32 %v352, %v543
  %v581 = vmul.f32 %v355, %v548
  %v582 = vpack.c.bf16 %v551, %v550
  %v583 = vpack.c.bf16 %v553, %v552
  %v584 = vpack.c.bf16 %v555, %v554
  %v585 = vpack.c.bf16 %v557, %v556
  %v586 = vpack.c.bf16 %v559, %v558
  %v587 = vpack.c.bf16 %v561, %v560
  %v588 = vpack.c.bf16 %v563, %v562
  %v589 = vpack.c.bf16 %v565, %v564
  %v590 = vpack.c.bf16 %v567, %v566
  %v591 = vpack.c.bf16 %v569, %v568
  %v592 = vpack.c.bf16 %v571, %v570
  %v593 = vpack.c.bf16 %v573, %v572
  %v594 = vpack.c.bf16 %v575, %v574
  %v595 = vpack.c.bf16 %v577, %v576
  %v596 = vpack.c.bf16 %v579, %v578
  %v597 = vpack.c.bf16 %v581, %v580
  %v598 = vld [vmem:[%s3] sm:$0xf]
  %v599 = vld [vmem:[%s3 + $0x4] sm:$0xf]
  %v600 = vld [vmem:[%s3 + $0x8] sm:$0xf]
  %v601 = vld [vmem:[%s3 + $0xc] sm:$0xf]
  %v602 = vld [vmem:[%s3 + $0x10] sm:$0xf]
  %v603 = vld [vmem:[%s3 + $0x14] sm:$0xf]
  %v604 = vld [vmem:[%s3 + $0x18] sm:$0xf]
  %v605 = vld [vmem:[%s3 + $0x1c] sm:$0xf]
  %v606 = vld [vmem:[%s3 + $0x20] sm:$0xf]
  %v607 = vld [vmem:[%s3 + $0x24] sm:$0xf]
  %v608 = vld [vmem:[%s3 + $0x28] sm:$0xf]
  %v609 = vld [vmem:[%s3 + $0x2c] sm:$0xf]
  %v610 = vld [vmem:[%s3 + $0x30] sm:$0xf]
  %v611 = vld [vmem:[%s3 + $0x34] sm:$0xf]
  %v612 = vld [vmem:[%s3 + $0x38] sm:$0xf]
  %v613 = vld [vmem:[%s3 + $0x3c] sm:$0xf]
  %v614 = vld [vmem:[%s4] sm:$0x1]
  %v616 = vlaneseq
  %v617 = vshrl.u32 %v616, 7
  %v618 = vsub.s32 0, %v617
  %v619 = vrot.slane %v614, %v618
  %v637 = vunpack.c.l.b16 %v598
  %v638 = vunpack.c.l.b16 %v599
  %v639 = vunpack.c.l.b16 %v600
  %v640 = vunpack.c.l.b16 %v601
  %v641 = vunpack.c.l.b16 %v602
  %v642 = vunpack.c.l.b16 %v603
  %v643 = vunpack.c.l.b16 %v604
  %v644 = vunpack.c.l.b16 %v605
  %v645 = vunpack.c.l.b16 %v606
  %v646 = vunpack.c.l.b16 %v607
  %v647 = vunpack.c.l.b16 %v608
  %v648 = vunpack.c.l.b16 %v609
  %v649 = vunpack.c.l.b16 %v610
  %v650 = vunpack.c.l.b16 %v611
  %v651 = vunpack.c.l.b16 %v612
  %v652 = vunpack.c.l.b16 %v613
  %v653 = vpack.c.b16 %v638, %v637
  %v654 = vpack.c.b16 %v640, %v639
  %v655 = vpack.c.b16 %v642, %v641
  %v656 = vpack.c.b16 %v644, %v643
  %v657 = vpack.c.b16 %v646, %v645
  %v658 = vpack.c.b16 %v648, %v647
  %v659 = vpack.c.b16 %v650, %v649
  %v660 = vpack.c.b16 %v652, %v651
  %669 = vmatprep.subr.bf16.mxu0 0
  %670 = vmatpush1.bf16.msra.mxu0 %v653
  %671 = vmatprep.subr.bf16.mxu0 0
  %672 = vmatpush1.bf16.msra.mxu0 %v654
  %673 = vmatprep.subr.bf16.mxu0 0
  %674 = vmatpush1.bf16.msra.mxu0 %v655
  %675 = vmatprep.subr.bf16.mxu0 0
  %676 = vmatpush1.bf16.msra.mxu0 %v656
  %677 = vmatprep.subr.bf16.mxu0 0
  %678 = vmatpush1.bf16.msra.mxu0 %v657
  %679 = vmatprep.subr.bf16.mxu0 0
  %680 = vmatpush1.bf16.msra.mxu0 %v658
  %681 = vmatprep.subr.bf16.mxu0 0
  %682 = vmatpush1.bf16.msra.mxu0 %v659
  %683 = vmatprep.subr.bf16.mxu0 0
  %684 = vmatpush1.bf16.msra.mxu0 %v660
  %685 = vmatprep.subr.bf16.mxu0 0
  %686 = vmatpush1.bf16.msra.mxu0 0
  %687 = vmatprep.subr.bf16.mxu0 0
  %688 = vmatpush1.bf16.msra.mxu0 0
  %689 = vmatprep.subr.bf16.mxu0 0
  %690 = vmatpush1.bf16.msra.mxu0 0
  %691 = vmatprep.subr.bf16.mxu0 0
  %692 = vmatpush1.bf16.msra.mxu0 0
  %693 = vmatprep.subr.bf16.mxu0 0
  %694 = vmatpush1.bf16.msra.mxu0 0
  %695 = vmatprep.subr.bf16.mxu0 0
  %696 = vmatpush1.bf16.msra.mxu0 0
  %697 = vmatprep.subr.bf16.mxu0 0
  %698 = vmatpush1.bf16.msra.mxu0 0
  %699 = vmatprep.subr.bf16.mxu0 0
  %700 = vmatpush1.bf16.msra.mxu0 0
  %701 = vmatprep.mubr.bf16.mxu0 0
  %702 = vmatmul.mubr.bf16.gmra.mrb[0].mxu0 %v582
  %v703 = vpop.f32.mrb[0].mxu0
  %v704 = vadd.f32 %v619, %v703
  %v705 = vpop.f32.mrb[0].mxu0
  %v706 = vpop.f32.mrb[0].mxu0
  %v707 = vadd.f32 %v619, %v706
  %v708 = vpop.f32.mrb[0].mxu0
  %709 = vmatprep.mubr.bf16.mxu0 0
  %710 = vmatmul.mubr.bf16.gmra.mrb[0].mxu0 %v583
  %v711 = vpop.f32.mrb[0].mxu0
  %v712 = vadd.f32 %v619, %v711
  %v713 = vpop.f32.mrb[0].mxu0
  %v714 = vpop.f32.mrb[0].mxu0
  %v715 = vadd.f32 %v619, %v714
  %v716 = vpop.f32.mrb[0].mxu0
  %717 = vmatprep.mubr.bf16.mxu0 0
  %718 = vmatmul.mubr.bf16.gmra.mrb[0].mxu0 %v584
  %v719 = vpop.f32.mrb[0].mxu0
  %v720 = vadd.f32 %v619, %v719
  %v721 = vpop.f32.mrb[0].mxu0
  %v722 = vpop.f32.mrb[0].mxu0
  %v723 = vadd.f32 %v619, %v722
  %v724 = vpop.f32.mrb[0].mxu0
  %725 = vmatprep.mubr.bf16.mxu0 0
  %726 = vmatmul.mubr.bf16.gmra.mrb[0].mxu0 %v585
  %v727 = vpop.f32.mrb[0].mxu0
  %v728 = vadd.f32 %v619, %v727
  %v729 = vpop.f32.mrb[0].mxu0
  %v730 = vpop.f32.mrb[0].mxu0
  %v731 = vadd.f32 %v619, %v730
  %v732 = vpop.f32.mrb[0].mxu0
  %733 = vmatprep.mubr.bf16.mxu0 0
  %734 = vmatmul.mubr.bf16.gmra.mrb[0].mxu0 %v586
  %v735 = vpop.f32.mrb[0].mxu0
  %v736 = vadd.f32 %v619, %v735
  %v737 = vpop.f32.mrb[0].mxu0
  %v738 = vpop.f32.mrb[0].mxu0
  %v739 = vadd.f32 %v619, %v738
  %v740 = vpop.f32.mrb[0].mxu0
  %741 = vmatprep.mubr.bf16.mxu0 0
  %742 = vmatmul.mubr.bf16.gmra.mrb[0].mxu0 %v587
  %v743 = vpop.f32.mrb[0].mxu0
  %v744 = vadd.f32 %v619, %v743
  %v745 = vpop.f32.mrb[0].mxu0
  %v746 = vpop.f32.mrb[0].mxu0
  %v747 = vadd.f32 %v619, %v746
  %v748 = vpop.f32.mrb[0].mxu0
  %749 = vmatprep.mubr.bf16.mxu0 0
  %750 = vmatmul.mubr.bf16.gmra.mrb[0].mxu0 %v588
  %v751 = vpop.f32.mrb[0].mxu0
  %v752 = vadd.f32 %v619, %v751
  %v753 = vpop.f32.mrb[0].mxu0
  %v754 = vpop.f32.mrb[0].mxu0
  %v755 = vadd.f32 %v619, %v754
  %v756 = vpop.f32.mrb[0].mxu0
  %757 = vmatprep.mubr.bf16.mxu0 0
  %758 = vmatmul.mubr.bf16.gmra.mrb[0].mxu0 %v589
  %v759 = vpop.f32.mrb[0].mxu0
  %v760 = vadd.f32 %v619, %v759
  %v761 = vpop.f32.mrb[0].mxu0
  %v762 = vpop.f32.mrb[0].mxu0
  %v763 = vadd.f32 %v619, %v762
  %v764 = vpop.f32.mrb[0].mxu0
  %765 = vmatprep.mubr.bf16.mxu0 0
  %766 = vmatmul.mubr.bf16.gmra.mrb[0].mxu0 %v590
  %v767 = vpop.f32.mrb[0].mxu0
  %v768 = vadd.f32 %v619, %v767
  %v769 = vpop.f32.mrb[0].mxu0
  %v770 = vpop.f32.mrb[0].mxu0
  %v771 = vadd.f32 %v619, %v770
  %v772 = vpop.f32.mrb[0].mxu0
  %773 = vmatprep.mubr.bf16.mxu0 0
  %774 = vmatmul.mubr.bf16.gmra.mrb[0].mxu0 %v591
  %v775 = vpop.f32.mrb[0].mxu0
  %v776 = vadd.f32 %v619, %v775
  %v777 = vpop.f32.mrb[0].mxu0
  %v778 = vpop.f32.mrb[0].mxu0
  %v779 = vadd.f32 %v619, %v778
  %v780 = vpop.f32.mrb[0].mxu0
  %781 = vmatprep.mubr.bf16.mxu0 0
  %782 = vmatmul.mubr.bf16.gmra.mrb[0].mxu0 %v592
  %v783 = vpop.f32.mrb[0].mxu0
  %v784 = vadd.f32 %v619, %v783
  %v785 = vpop.f32.mrb[0].mxu0
  %v786 = vpop.f32.mrb[0].mxu0
  %v787 = vadd.f32 %v619, %v786
  %v788 = vpop.f32.mrb[0].mxu0
  %789 = vmatprep.mubr.bf16.mxu0 0
  %790 = vmatmul.mubr.bf16.gmra.mrb[0].mxu0 %v593
  %v791 = vpop.f32.mrb[0].mxu0
  %v792 = vadd.f32 %v619, %v791
  %v793 = vpop.f32.mrb[0].mxu0
  %v794 = vpop.f32.mrb[0].mxu0
  %v795 = vadd.f32 %v619, %v794
  %v796 = vpop.f32.mrb[0].mxu0
  %797 = vmatprep.mubr.bf16.mxu0 0
  %798 = vmatmul.mubr.bf16.gmra.mrb[0].mxu0 %v594
  %v799 = vpop.f32.mrb[0].mxu0
  %v800 = vadd.f32 %v619, %v799
  %v801 = vpop.f32.mrb[0].mxu0
  %v802 = vpop.f32.mrb[0].mxu0
  %v803 = vadd.f32 %v619, %v802
  %v804 = vpop.f32.mrb[0].mxu0
  %805 = vmatprep.mubr.bf16.mxu0 0
  %806 = vmatmul.mubr.bf16.gmra.mrb[0].mxu0 %v595
  %v807 = vpop.f32.mrb[0].mxu0
  %v808 = vadd.f32 %v619, %v807
  %v809 = vpop.f32.mrb[0].mxu0
  %v810 = vpop.f32.mrb[0].mxu0
  %v811 = vadd.f32 %v619, %v810
  %v812 = vpop.f32.mrb[0].mxu0
  %813 = vmatprep.mubr.bf16.mxu0 0
  %814 = vmatmul.mubr.bf16.gmra.mrb[0].mxu0 %v596
  %v815 = vpop.f32.mrb[0].mxu0
  %v816 = vadd.f32 %v619, %v815
  %v817 = vpop.f32.mrb[0].mxu0
  %v818 = vpop.f32.mrb[0].mxu0
  %v819 = vadd.f32 %v619, %v818
  %v820 = vpop.f32.mrb[0].mxu0
  %821 = vmatprep.mubr.bf16.mxu0 0
  %822 = vmatmul.mubr.bf16.gmra.mrb[0].mxu0 %v597
  %v823 = vpop.f32.mrb[0].mxu0
  %v824 = vadd.f32 %v619, %v823
  %v825 = vpop.f32.mrb[0].mxu0
  %v826 = vpop.f32.mrb[0].mxu0
  %v827 = vadd.f32 %v619, %v826
  %v828 = vpop.f32.mrb[0].mxu0
  %829 = vdwg.mxu0
  %830 = vst [vmem:[%s5] sm:$0xff] %v704
  %831 = vst [vmem:[%s5 + $0x8] sm:$0xff] %v707
  %832 = vst [vmem:[%s5 + $0x10] sm:$0xff] %v712
  %833 = vst [vmem:[%s5 + $0x18] sm:$0xff] %v715
  %834 = vst [vmem:[%s5 + $0x20] sm:$0xff] %v720
  %835 = vst [vmem:[%s5 + $0x28] sm:$0xff] %v723
  %836 = vst [vmem:[%s5 + $0x30] sm:$0xff] %v728
  %837 = vst [vmem:[%s5 + $0x38] sm:$0xff] %v731
  %838 = vst [vmem:[%s5 + $0x40] sm:$0xff] %v736
  %839 = vst [vmem:[%s5 + $0x48] sm:$0xff] %v739
  %840 = vst [vmem:[%s5 + $0x50] sm:$0xff] %v744
  %841 = vst [vmem:[%s5 + $0x58] sm:$0xff] %v747
  %842 = vst [vmem:[%s5 + $0x60] sm:$0xff] %v752
  %843 = vst [vmem:[%s5 + $0x68] sm:$0xff] %v755
  %844 = vst [vmem:[%s5 + $0x70] sm:$0xff] %v760
  %845 = vst [vmem:[%s5 + $0x78] sm:$0xff] %v763
  %846 = vst [vmem:[%s5 + $0x80] sm:$0xff] %v768
  %847 = vst [vmem:[%s5 + $0x88] sm:$0xff] %v771
  %848 = vst [vmem:[%s5 + $0x90] sm:$0xff] %v776
  %849 = vst [vmem:[%s5 + $0x98] sm:$0xff] %v779
  %850 = vst [vmem:[%s5 + $0xa0] sm:$0xff] %v784
  %851 = vst [vmem:[%s5 + $0xa8] sm:$0xff] %v787
  %852 = vst [vmem:[%s5 + $0xb0] sm:$0xff] %v792
  %853 = vst [vmem:[%s5 + $0xb8] sm:$0xff] %v795
  %854 = vst [vmem:[%s5 + $0xc0] sm:$0xff] %v800
  %855 = vst [vmem:[%s5 + $0xc8] sm:$0xff] %v803
  %856 = vst [vmem:[%s5 + $0xd0] sm:$0xff] %v808
  %857 = vst [vmem:[%s5 + $0xd8] sm:$0xff] %v811
  %858 = vst [vmem:[%s5 + $0xe0] sm:$0xff] %v816
  %859 = vst [vmem:[%s5 + $0xe8] sm:$0xff] %v819
  %860 = vst [vmem:[%s5 + $0xf0] sm:$0xff] %v824
  %861 = vst [vmem:[%s5 + $0xf8] sm:$0xff] %v827
  // Predicated region
  $region22: #{gnn_forward.3} parent=0 // pred_check
    _
  $region23: #{gnn_forward.3} parent=0 // pred_check_branch
    %863 = sbr.rel (0) target = $region25
  $region24: #{gnn_forward.3} parent=0 // pred_region
    _
  $region25: #{gnn_forward.3} parent=0 // pred_fallthru
    _
  // Predicated region
  $region26: #{gnn_forward.3} parent=0 // pred_check
    _
  $region27: #{gnn_forward.3} parent=0 // pred_check_branch
    %865 = sbr.rel (0) target = $region29
  $region28: #{gnn_forward.3} parent=0 // pred_region
    _
  $region29: #{gnn_forward.3} parent=0 // pred_fallthru
    _

</llo_original>
